<compile_context>
chip_gen: v5e
topology: v5e:2x2
jax: 0.10.0
libtpu: 0.0.40
codegen_flags: <defaults>
</compile_context>

<pallas_src>
from functools import partial

import jax
import jax.numpy as jnp
from jax.experimental import pallas as pl
from jax.experimental.pallas import tpu as pltpu


def _spatial_attention_kernel(x_ref, w_ref, mask_ref, o_ref, sum_acc, max_acc,
                              *, C, H, W, K):
    """One grid step: accumulate channel sum/max for a (NB, Cb, H*W) block and,
    on the last channel block, run the 7x7 conv + sigmoid and store (NB, H*W)."""
    HW = H * W
    p = K // 2

    c_idx = pl.program_id(1)
    n_c = pl.num_programs(1)

    # ---- init running channel-sum / channel-max (scratch persists across c) --
    @pl.when(c_idx == 0)
    def _init():
        sum_acc[...] = jnp.zeros(sum_acc.shape, sum_acc.dtype)
        max_acc[...] = jnp.full(max_acc.shape, -jnp.inf, max_acc.dtype)

    # ---- whole-block channel reduction on lane-dense (NB, Cb, HW) tile -------
    # One cross-sublane reduce + one full-tile store per accumulator (no per-row
    # masked vst.msk traffic).
    xb = x_ref[...].astype(jnp.float32)                        # (NB, Cb, HW)
    sum_acc[...] = sum_acc[...] + jnp.sum(xb, axis=1)
    max_acc[...] = jnp.maximum(max_acc[...], jnp.max(xb, axis=1))

    # ---- finalize: 7x7 conv (avg,max -> 1 channel) + sigmoid, lane-dense -----
    @pl.when(c_idx == n_c - 1)
    def _finalize():
        avg = sum_acc[...] * (1.0 / C)                         # (NB, HW)
        mx = max_acc[...]                                      # (NB, HW)

        masks = mask_ref[...]                                  # (2K, HW), loaded once

        # Hoisted kw-direction taps: K lane-rolled, W-border-masked copies of
        # each reduced plane (2*(K-1) rolls total instead of 2*K*K slices).
        a_taps, m_taps = [], []
        for kw in range(K):
            dw = kw - p
            if dw == 0:
                a_taps.append(avg)
                m_taps.append(mx)
            else:
                sh = (-dw) % HW
                mw = masks[kw:kw + 1, :]                       # (1, HW) W-border mask
                a_taps.append(pltpu.roll(avg, sh, axis=1) * mw)
                m_taps.append(pltpu.roll(mx, sh, axis=1) * mw)

        acc = jnp.zeros_like(avg)
        for kh in range(K):
            dh = kh - p
            # Row-partial for kernel row kh: pure VPU FMAs, no shifts.
            q = jnp.zeros_like(avg)
            for kw in range(K):
                w_a = w_ref[kh * K + kw]
                w_m = w_ref[K * K + kh * K + kw]
                q = q + w_a * a_taps[kw] + w_m * m_taps[kw]
            if dh == 0:
                acc = acc + q
            else:
                sh = (-dh * W) % HW
                mh = masks[K + kh:K + kh + 1, :]               # (1, HW) H-border mask
                acc = acc + pltpu.roll(q, sh, axis=1) * mh

        o_ref[...] = jax.nn.sigmoid(acc).astype(o_ref.dtype)


def _divisors(n):
    return [d for d in range(1, n + 1) if n % d == 0]


def spatial_attention(x, conv_w):
    """x: (N, C, H, W).  conv_w: (1, 2, K, K) float32 (OIHW, like nn.Conv2d)."""
    N, C, H, W = x.shape
    K = conv_w.shape[-1]
    p = K // 2
    HW = H * W
    itemsize = jnp.dtype(x.dtype).itemsize

    # Lane-dense views: reduction input (N, C, HW), output (N, HW).
    x_flat = x.reshape(N, C, HW)
    w_flat = conv_w.reshape(-1).astype(jnp.float32)            # (2*K*K,) in SMEM

    # Multiplicative border masks for "same" padding in the flattened layout:
    # rows [0, K) mask the W direction per kw, rows [K, 2K) mask H per kh.
    col = jnp.arange(HW, dtype=jnp.int32) % W
    rowi = jnp.arange(HW, dtype=jnp.int32) // W
    mask_rows = []
    for kidx in range(K):
        d = kidx - p
        mask_rows.append(((col + d >= 0) & (col + d < W)).astype(jnp.float32))
    for kidx in range(K):
        d = kidx - p
        mask_rows.append(((rowi + d >= 0) & (rowi + d < H)).astype(jnp.float32))
    masks = jnp.stack(mask_rows, axis=0)                        # (2K, HW)

    # ---- generation-aware VMEM budgets ---------------------------------------
    try:
        vmem_cap = int(pltpu.get_tpu_info().vmem_capacity_bytes)
    except Exception:
        vmem_cap = 64 * 1024 * 1024                             # v7x per-TC size (safe)
    # ~96 MiB on v5e/v6e (128 MiB physical), ~48 MiB on v7x (64 MiB physical).
    vmem_limit = min(vmem_cap * 3 // 4, 96 * 1024 * 1024)

    # ---- NB: largest (8-aligned or full-N) divisor under ~2 MiB / accumulator,
    #      keeping >=2 batch grid steps when a sublane-full split exists (v7x).
    acc_budget = 2 * 1024 * 1024
    nb_cands = [d for d in _divisors(N) if d % 8 == 0 or d == N]
    nb_fitting = [d for d in nb_cands if d * HW * 4 <= acc_budget] or [min(nb_cands)]
    NB = max(nb_fitting)
    nb_split = [d for d in nb_fitting if d <= N // 2 and d % 8 == 0]
    if nb_split:
        NB = max(nb_split)

    # ---- Cb: prefer a single channel step; otherwise the largest
    #      (8-aligned or full-C) divisor whose double-buffered block fits.
    fixed = (2 * NB * HW * 4                    # two f32 accumulators
             + 2 * (2 * K) * HW * 4             # masks (double-buffered)
             + 2 * NB * HW * itemsize           # output block (double-buffered)
             + (1 << 20))                       # headroom (SMEM weights, spills)
    in_budget = max(vmem_limit - fixed, 1 << 20)
    per_c = 2 * NB * HW * itemsize              # double-buffered bytes per channel
    cb_cands = [d for d in _divisors(C) if d % 8 == 0 or d == C]
    cb_fitting = [d for d in cb_cands if d * per_c <= in_budget] or [min(cb_cands)]
    Cb = max(cb_fitting)

    grid = (N // NB, C // Cb)

    kernel = partial(_spatial_attention_kernel, C=C, H=H, W=W, K=K)

    out_flat = pl.pallas_call(
        kernel,
        out_shape=jax.ShapeDtypeStruct((N, HW), x.dtype),
        grid_spec=pltpu.PrefetchScalarGridSpec(
            num_scalar_prefetch=0,
            grid=grid,
            in_specs=[
                pl.BlockSpec((NB, Cb, HW), lambda b, c: (b, c, 0)),
                pl.BlockSpec(memory_space=pltpu.MemorySpace.SMEM),
                pl.BlockSpec((2 * K, HW), lambda b, c: (0, 0)),
            ],
            out_specs=pl.BlockSpec((NB, HW), lambda b, c: (b, 0)),
            scratch_shapes=[
                pltpu.VMEM((NB, HW), jnp.float32),   # running channel sum
                pltpu.VMEM((NB, HW), jnp.float32),   # running channel max
            ],
        ),
        compiler_params=pltpu.CompilerParams(
            dimension_semantics=("parallel", "arbitrary"),
            vmem_limit_bytes=int(vmem_limit),
        ),
    )(x_flat, w_flat, masks)

    return out_flat.reshape(N, 1, H, W)


def _reference(x, conv_w):
    avg = jnp.mean(x, axis=1, keepdims=True)
    mx = jnp.max(x, axis=1, keepdims=True)
    xc = jnp.concatenate([avg, mx], axis=1)
    pad = conv_w.shape[-1] // 2
    y = jax.lax.conv_general_dilated(
        xc, conv_w, window_strides=(1, 1),
        padding=((pad, pad), (pad, pad)),
        dimension_numbers=("NCHW", "OIHW", "NCHW"))
    return jax.nn.sigmoid(y)


if __name__ == "__main__":
    key = jax.random.PRNGKey(0)
    kx, kw = jax.random.split(key)

    N, C, H, W = 2, 4, 16, 16
    K = 7
    x = jax.random.normal(kx, (N, C, H, W), dtype=jnp.float32)
    # Deterministic conv1 weight (OIHW = (1, 2, 7, 7)), kaiming-ish scale.
    fan_in = 2 * K * K
    conv_w = jax.random.normal(kw, (1, 2, K, K), dtype=jnp.float32) * (1.0 / fan_in) ** 0.5

    out = spatial_attention(x, conv_w)
    out = jax.block_until_ready(out)

    ref = _reference(x, conv_w)
    assert out.shape == (N, 1, H, W)
    assert jnp.allclose(out, ref, atol=2e-5, rtol=2e-5), "mismatch vs reference"
    print("KERNEL_OK")
</pallas_src>

<mosaic_0001>
module attributes {stable_mosaic.version = 11 : i64} {
  func.func @_spatial_attention_kernel(%arg0: i32, %arg1: i32, %arg2: memref<2x4x256xf32, #tpu.memory_space<vmem>>, %arg3: memref<98xf32, #tpu.memory_space<smem>>, %arg4: memref<14x256xf32, #tpu.memory_space<vmem>>, %arg5: memref<2x256xf32, #tpu.memory_space<vmem>>, %arg6: memref<2x256xf32, #tpu.memory_space<vmem>>, %arg7: memref<2x256xf32, #tpu.memory_space<vmem>>) attributes {dimension_semantics = [#tpu.dimension_semantics<parallel>, #tpu.dimension_semantics<arbitrary>], iteration_bounds = array<i64: 1, 1>, scalar_prefetch = 0 : i64, scratch_operands = 2 : i64, tpu.core_type = #tpu.core_type<tc>, window_params = [{transform_indices = @transform_0, window_bounds = array<i64: 2, 4, 256>}, {transform_indices = @transform_1, window_bounds = array<i64: 98>}, {pipeline_mode = #tpu.pipeline_mode<synchronous>, transform_indices = @transform_2, window_bounds = array<i64: 14, 256>}, {transform_indices = @transform_3, window_bounds = array<i64: 2, 256>}]} {
    %c0_i32 = arith.constant 0 : i32
    %0 = arith.cmpi eq, %arg1, %c0_i32 : i32
    %1 = arith.extui %0 : i1 to i32
    %c0_i32_0 = arith.constant 0 : i32
    %2 = arith.cmpi ne, %1, %c0_i32_0 : i32
    scf.if %2 {
      %cst_14 = arith.constant 0.000000e+00 : f32
      %15 = vector.broadcast %cst_14 : f32 to vector<2x256xf32>
      %c0_15 = arith.constant 0 : index
      %c0_16 = arith.constant 0 : index
      %16 = vector.load %arg6[%c0_15, %c0_16] : memref<2x256xf32, #tpu.memory_space<vmem>>, vector<2x256xf32>
      tpu.vector_store %arg6[%c0_15, %c0_16], %15 {strides = array<i32>} : memref<2x256xf32, #tpu.memory_space<vmem>>, vector<2x256xf32>,
      %cst_17 = arith.constant 0xFF800000 : f32
      %17 = vector.broadcast %cst_17 : f32 to vector<2x256xf32>
      %c0_18 = arith.constant 0 : index
      %c0_19 = arith.constant 0 : index
      %18 = vector.load %arg7[%c0_18, %c0_19] : memref<2x256xf32, #tpu.memory_space<vmem>>, vector<2x256xf32>
      tpu.vector_store %arg7[%c0_18, %c0_19], %17 {strides = array<i32>} : memref<2x256xf32, #tpu.memory_space<vmem>>, vector<2x256xf32>,
    } else {
    }
    %c0 = arith.constant 0 : index
    %c0_1 = arith.constant 0 : index
    %c0_2 = arith.constant 0 : index
    %3 = vector.load %arg2[%c0, %c0_1, %c0_2] : memref<2x4x256xf32, #tpu.memory_space<vmem>>, vector<2x4x256xf32>
    %c0_3 = arith.constant 0 : index
    %c0_4 = arith.constant 0 : index
    %4 = vector.load %arg6[%c0_3, %c0_4] : memref<2x256xf32, #tpu.memory_space<vmem>>, vector<2x256xf32>
    %cst = arith.constant dense<0.000000e+00> : vector<2x256xf32>
    %5 = vector.multi_reduction <add>, %3, %cst [1] : vector<2x4x256xf32> to vector<2x256xf32>
    %6 = arith.addf %4, %5 : vector<2x256xf32>
    %c0_5 = arith.constant 0 : index
    %c0_6 = arith.constant 0 : index
    %7 = vector.load %arg6[%c0_5, %c0_6] : memref<2x256xf32, #tpu.memory_space<vmem>>, vector<2x256xf32>
    tpu.vector_store %arg6[%c0_5, %c0_6], %6 {strides = array<i32>} : memref<2x256xf32, #tpu.memory_space<vmem>>, vector<2x256xf32>,
    %c0_7 = arith.constant 0 : index
    %c0_8 = arith.constant 0 : index
    %8 = vector.load %arg7[%c0_7, %c0_8] : memref<2x256xf32, #tpu.memory_space<vmem>>, vector<2x256xf32>
    %cst_9 = arith.constant dense<0xFF800000> : vector<2x256xf32>
    %9 = vector.multi_reduction <maximumf>, %3, %cst_9 [1] : vector<2x4x256xf32> to vector<2x256xf32>
    %10 = arith.maximumf %8, %9 : vector<2x256xf32>
    %c0_10 = arith.constant 0 : index
    %c0_11 = arith.constant 0 : index
    %11 = vector.load %arg7[%c0_10, %c0_11] : memref<2x256xf32, #tpu.memory_space<vmem>>, vector<2x256xf32>
    tpu.vector_store %arg7[%c0_10, %c0_11], %10 {strides = array<i32>} : memref<2x256xf32, #tpu.memory_space<vmem>>, vector<2x256xf32>,
    %c0_i32_12 = arith.constant 0 : i32
    %12 = arith.cmpi eq, %arg1, %c0_i32_12 : i32
    %13 = arith.extui %12 : i1 to i32
    %c0_i32_13 = arith.constant 0 : i32
    %14 = arith.cmpi ne, %13, %c0_i32_13 : i32
    scf.if %14 {
      %c0_14 = arith.constant 0 : index
      %c0_15 = arith.constant 0 : index
      %15 = vector.load %arg6[%c0_14, %c0_15] : memref<2x256xf32, #tpu.memory_space<vmem>>, vector<2x256xf32>
      %cst_16 = arith.constant 2.500000e-01 : f32
      %16 = vector.broadcast %cst_16 : f32 to vector<2x256xf32>
      %17 = arith.mulf %15, %16 : vector<2x256xf32>
      %c0_17 = arith.constant 0 : index
      %c0_18 = arith.constant 0 : index
      %18 = vector.load %arg7[%c0_17, %c0_18] : memref<2x256xf32, #tpu.memory_space<vmem>>, vector<2x256xf32>
      %c0_19 = arith.constant 0 : index
      %c0_20 = arith.constant 0 : index
      %19 = vector.load %arg4[%c0_19, %c0_20] : memref<14x256xf32, #tpu.memory_space<vmem>>, vector<14x256xf32>
      %20 = vector.extract_strided_slice %19 {offsets = [0, 0], sizes = [1, 256], strides = [1, 1]} : vector<14x256xf32> to vector<1x256xf32>
      %c3_i32 = arith.constant 3 : i32
      %21 = tpu.dynamic_rotate %17 by %c3_i32 dim 1 : vector<2x256xf32>, i32 -> vector<2x256xf32>
      %22 = vector.broadcast %20 : vector<1x256xf32> to vector<2x256xf32>
      %23 = arith.mulf %21, %22 : vector<2x256xf32>
      %c3_i32_21 = arith.constant 3 : i32
      %24 = tpu.dynamic_rotate %18 by %c3_i32_21 dim 1 : vector<2x256xf32>, i32 -> vector<2x256xf32>
      %25 = vector.broadcast %20 : vector<1x256xf32> to vector<2x256xf32>
      %26 = arith.mulf %24, %25 : vector<2x256xf32>
      %27 = vector.extract_strided_slice %19 {offsets = [1, 0], sizes = [1, 256], strides = [1, 1]} : vector<14x256xf32> to vector<1x256xf32>
      %c2_i32 = arith.constant 2 : i32
      %28 = tpu.dynamic_rotate %17 by %c2_i32 dim 1 : vector<2x256xf32>, i32 -> vector<2x256xf32>
      %29 = vector.broadcast %27 : vector<1x256xf32> to vector<2x256xf32>
      %30 = arith.mulf %28, %29 : vector<2x256xf32>
      %c2_i32_22 = arith.constant 2 : i32
      %31 = tpu.dynamic_rotate %18 by %c2_i32_22 dim 1 : vector<2x256xf32>, i32 -> vector<2x256xf32>
      %32 = vector.broadcast %27 : vector<1x256xf32> to vector<2x256xf32>
      %33 = arith.mulf %31, %32 : vector<2x256xf32>
      %34 = vector.extract_strided_slice %19 {offsets = [2, 0], sizes = [1, 256], strides = [1, 1]} : vector<14x256xf32> to vector<1x256xf32>
      %c1_i32 = arith.constant 1 : i32
      %35 = tpu.dynamic_rotate %17 by %c1_i32 dim 1 : vector<2x256xf32>, i32 -> vector<2x256xf32>
      %36 = vector.broadcast %34 : vector<1x256xf32> to vector<2x256xf32>
      %37 = arith.mulf %35, %36 : vector<2x256xf32>
      %c1_i32_23 = arith.constant 1 : i32
      %38 = tpu.dynamic_rotate %18 by %c1_i32_23 dim 1 : vector<2x256xf32>, i32 -> vector<2x256xf32>
      %39 = vector.broadcast %34 : vector<1x256xf32> to vector<2x256xf32>
      %40 = arith.mulf %38, %39 : vector<2x256xf32>
      %41 = vector.extract_strided_slice %19 {offsets = [4, 0], sizes = [1, 256], strides = [1, 1]} : vector<14x256xf32> to vector<1x256xf32>
      %c255_i32 = arith.constant 255 : i32
      %42 = tpu.dynamic_rotate %17 by %c255_i32 dim 1 : vector<2x256xf32>, i32 -> vector<2x256xf32>
      %43 = vector.broadcast %41 : vector<1x256xf32> to vector<2x256xf32>
      %44 = arith.mulf %42, %43 : vector<2x256xf32>
      %c255_i32_24 = arith.constant 255 : i32
      %45 = tpu.dynamic_rotate %18 by %c255_i32_24 dim 1 : vector<2x256xf32>, i32 -> vector<2x256xf32>
      %46 = vector.broadcast %41 : vector<1x256xf32> to vector<2x256xf32>
      %47 = arith.mulf %45, %46 : vector<2x256xf32>
      %48 = vector.extract_strided_slice %19 {offsets = [5, 0], sizes = [1, 256], strides = [1, 1]} : vector<14x256xf32> to vector<1x256xf32>
      %c254_i32 = arith.constant 254 : i32
      %49 = tpu.dynamic_rotate %17 by %c254_i32 dim 1 : vector<2x256xf32>, i32 -> vector<2x256xf32>
      %50 = vector.broadcast %48 : vector<1x256xf32> to vector<2x256xf32>
      %51 = arith.mulf %49, %50 : vector<2x256xf32>
      %c254_i32_25 = arith.constant 254 : i32
      %52 = tpu.dynamic_rotate %18 by %c254_i32_25 dim 1 : vector<2x256xf32>, i32 -> vector<2x256xf32>
      %53 = vector.broadcast %48 : vector<1x256xf32> to vector<2x256xf32>
      %54 = arith.mulf %52, %53 : vector<2x256xf32>
      %55 = vector.extract_strided_slice %19 {offsets = [6, 0], sizes = [1, 256], strides = [1, 1]} : vector<14x256xf32> to vector<1x256xf32>
      %c253_i32 = arith.constant 253 : i32
      %56 = tpu.dynamic_rotate %17 by %c253_i32 dim 1 : vector<2x256xf32>, i32 -> vector<2x256xf32>
      %57 = vector.broadcast %55 : vector<1x256xf32> to vector<2x256xf32>
      %58 = arith.mulf %56, %57 : vector<2x256xf32>
      %c253_i32_26 = arith.constant 253 : i32
      %59 = tpu.dynamic_rotate %18 by %c253_i32_26 dim 1 : vector<2x256xf32>, i32 -> vector<2x256xf32>
      %60 = vector.broadcast %55 : vector<1x256xf32> to vector<2x256xf32>
      %61 = arith.mulf %59, %60 : vector<2x256xf32>
      %cst_27 = arith.constant 0.000000e+00 : f32
      %62 = vector.broadcast %cst_27 : f32 to vector<2x256xf32>
      %cst_28 = arith.constant 0.000000e+00 : f32
      %63 = vector.broadcast %cst_28 : f32 to vector<2x256xf32>
      %c0_29 = arith.constant 0 : index
      %64 = memref.load %arg3[%c0_29] : memref<98xf32, #tpu.memory_space<smem>>
      %c49 = arith.constant 49 : index
      %65 = memref.load %arg3[%c49] : memref<98xf32, #tpu.memory_space<smem>>
      %66 = vector.broadcast %64 : f32 to vector<2x256xf32>
      %67 = arith.mulf %66, %23 : vector<2x256xf32>
      %68 = arith.addf %63, %67 : vector<2x256xf32>
      %69 = vector.broadcast %65 : f32 to vector<2x256xf32>
      %70 = arith.mulf %69, %26 : vector<2x256xf32>
      %71 = arith.addf %68, %70 : vector<2x256xf32>
      %c1 = arith.constant 1 : index
      %72 = memref.load %arg3[%c1] : memref<98xf32, #tpu.memory_space<smem>>
      %c50 = arith.constant 50 : index
      %73 = memref.load %arg3[%c50] : memref<98xf32, #tpu.memory_space<smem>>
      %74 = vector.broadcast %72 : f32 to vector<2x256xf32>
      %75 = arith.mulf %74, %30 : vector<2x256xf32>
      %76 = arith.addf %71, %75 : vector<2x256xf32>
      %77 = vector.broadcast %73 : f32 to vector<2x256xf32>
      %78 = arith.mulf %77, %33 : vector<2x256xf32>
      %79 = arith.addf %76, %78 : vector<2x256xf32>
      %c2 = arith.constant 2 : index
      %80 = memref.load %arg3[%c2] : memref<98xf32, #tpu.memory_space<smem>>
      %c51 = arith.constant 51 : index
      %81 = memref.load %arg3[%c51] : memref<98xf32, #tpu.memory_space<smem>>
      %82 = vector.broadcast %80 : f32 to vector<2x256xf32>
      %83 = arith.mulf %82, %37 : vector<2x256xf32>
      %84 = arith.addf %79, %83 : vector<2x256xf32>
      %85 = vector.broadcast %81 : f32 to vector<2x256xf32>
      %86 = arith.mulf %85, %40 : vector<2x256xf32>
      %87 = arith.addf %84, %86 : vector<2x256xf32>
      %c3 = arith.constant 3 : index
      %88 = memref.load %arg3[%c3] : memref<98xf32, #tpu.memory_space<smem>>
      %c52 = arith.constant 52 : index
      %89 = memref.load %arg3[%c52] : memref<98xf32, #tpu.memory_space<smem>>
      %90 = vector.broadcast %88 : f32 to vector<2x256xf32>
      %91 = arith.mulf %90, %17 : vector<2x256xf32>
      %92 = arith.addf %87, %91 : vector<2x256xf32>
      %93 = vector.broadcast %89 : f32 to vector<2x256xf32>
      %94 = arith.mulf %93, %18 : vector<2x256xf32>
      %95 = arith.addf %92, %94 : vector<2x256xf32>
      %c4 = arith.constant 4 : index
      %96 = memref.load %arg3[%c4] : memref<98xf32, #tpu.memory_space<smem>>
      %c53 = arith.constant 53 : index
      %97 = memref.load %arg3[%c53] : memref<98xf32, #tpu.memory_space<smem>>
      %98 = vector.broadcast %96 : f32 to vector<2x256xf32>
      %99 = arith.mulf %98, %44 : vector<2x256xf32>
      %100 = arith.addf %95, %99 : vector<2x256xf32>
      %101 = vector.broadcast %97 : f32 to vector<2x256xf32>
      %102 = arith.mulf %101, %47 : vector<2x256xf32>
      %103 = arith.addf %100, %102 : vector<2x256xf32>
      %c5 = arith.constant 5 : index
      %104 = memref.load %arg3[%c5] : memref<98xf32, #tpu.memory_space<smem>>
      %c54 = arith.constant 54 : index
      %105 = memref.load %arg3[%c54] : memref<98xf32, #tpu.memory_space<smem>>
      %106 = vector.broadcast %104 : f32 to vector<2x256xf32>
      %107 = arith.mulf %106, %51 : vector<2x256xf32>
      %108 = arith.addf %103, %107 : vector<2x256xf32>
      %109 = vector.broadcast %105 : f32 to vector<2x256xf32>
      %110 = arith.mulf %109, %54 : vector<2x256xf32>
      %111 = arith.addf %108, %110 : vector<2x256xf32>
      %c6 = arith.constant 6 : index
      %112 = memref.load %arg3[%c6] : memref<98xf32, #tpu.memory_space<smem>>
      %c55 = arith.constant 55 : index
      %113 = memref.load %arg3[%c55] : memref<98xf32, #tpu.memory_space<smem>>
      %114 = vector.broadcast %112 : f32 to vector<2x256xf32>
      %115 = arith.mulf %114, %58 : vector<2x256xf32>
      %116 = arith.addf %111, %115 : vector<2x256xf32>
      %117 = vector.broadcast %113 : f32 to vector<2x256xf32>
      %118 = arith.mulf %117, %61 : vector<2x256xf32>
      %119 = arith.addf %116, %118 : vector<2x256xf32>
      %120 = vector.extract_strided_slice %19 {offsets = [7, 0], sizes = [1, 256], strides = [1, 1]} : vector<14x256xf32> to vector<1x256xf32>
      %c48_i32 = arith.constant 48 : i32
      %121 = tpu.dynamic_rotate %119 by %c48_i32 dim 1 : vector<2x256xf32>, i32 -> vector<2x256xf32>
      %122 = vector.broadcast %120 : vector<1x256xf32> to vector<2x256xf32>
      %123 = arith.mulf %121, %122 : vector<2x256xf32>
      %124 = arith.addf %62, %123 : vector<2x256xf32>
      %cst_30 = arith.constant 0.000000e+00 : f32
      %125 = vector.broadcast %cst_30 : f32 to vector<2x256xf32>
      %c7 = arith.constant 7 : index
      %126 = memref.load %arg3[%c7] : memref<98xf32, #tpu.memory_space<smem>>
      %c56 = arith.constant 56 : index
      %127 = memref.load %arg3[%c56] : memref<98xf32, #tpu.memory_space<smem>>
      %128 = vector.broadcast %126 : f32 to vector<2x256xf32>
      %129 = arith.mulf %128, %23 : vector<2x256xf32>
      %130 = arith.addf %125, %129 : vector<2x256xf32>
      %131 = vector.broadcast %127 : f32 to vector<2x256xf32>
      %132 = arith.mulf %131, %26 : vector<2x256xf32>
      %133 = arith.addf %130, %132 : vector<2x256xf32>
      %c8 = arith.constant 8 : index
      %134 = memref.load %arg3[%c8] : memref<98xf32, #tpu.memory_space<smem>>
      %c57 = arith.constant 57 : index
      %135 = memref.load %arg3[%c57] : memref<98xf32, #tpu.memory_space<smem>>
      %136 = vector.broadcast %134 : f32 to vector<2x256xf32>
      %137 = arith.mulf %136, %30 : vector<2x256xf32>
      %138 = arith.addf %133, %137 : vector<2x256xf32>
      %139 = vector.broadcast %135 : f32 to vector<2x256xf32>
      %140 = arith.mulf %139, %33 : vector<2x256xf32>
      %141 = arith.addf %138, %140 : vector<2x256xf32>
      %c9 = arith.constant 9 : index
      %142 = memref.load %arg3[%c9] : memref<98xf32, #tpu.memory_space<smem>>
      %c58 = arith.constant 58 : index
      %143 = memref.load %arg3[%c58] : memref<98xf32, #tpu.memory_space<smem>>
      %144 = vector.broadcast %142 : f32 to vector<2x256xf32>
      %145 = arith.mulf %144, %37 : vector<2x256xf32>
      %146 = arith.addf %141, %145 : vector<2x256xf32>
      %147 = vector.broadcast %143 : f32 to vector<2x256xf32>
      %148 = arith.mulf %147, %40 : vector<2x256xf32>
      %149 = arith.addf %146, %148 : vector<2x256xf32>
      %c10 = arith.constant 10 : index
      %150 = memref.load %arg3[%c10] : memref<98xf32, #tpu.memory_space<smem>>
      %c59 = arith.constant 59 : index
      %151 = memref.load %arg3[%c59] : memref<98xf32, #tpu.memory_space<smem>>
      %152 = vector.broadcast %150 : f32 to vector<2x256xf32>
      %153 = arith.mulf %152, %17 : vector<2x256xf32>
      %154 = arith.addf %149, %153 : vector<2x256xf32>
      %155 = vector.broadcast %151 : f32 to vector<2x256xf32>
      %156 = arith.mulf %155, %18 : vector<2x256xf32>
      %157 = arith.addf %154, %156 : vector<2x256xf32>
      %c11 = arith.constant 11 : index
      %158 = memref.load %arg3[%c11] : memref<98xf32, #tpu.memory_space<smem>>
      %c60 = arith.constant 60 : index
      %159 = memref.load %arg3[%c60] : memref<98xf32, #tpu.memory_space<smem>>
      %160 = vector.broadcast %158 : f32 to vector<2x256xf32>
      %161 = arith.mulf %160, %44 : vector<2x256xf32>
      %162 = arith.addf %157, %161 : vector<2x256xf32>
      %163 = vector.broadcast %159 : f32 to vector<2x256xf32>
      %164 = arith.mulf %163, %47 : vector<2x256xf32>
      %165 = arith.addf %162, %164 : vector<2x256xf32>
      %c12 = arith.constant 12 : index
      %166 = memref.load %arg3[%c12] : memref<98xf32, #tpu.memory_space<smem>>
      %c61 = arith.constant 61 : index
      %167 = memref.load %arg3[%c61] : memref<98xf32, #tpu.memory_space<smem>>
      %168 = vector.broadcast %166 : f32 to vector<2x256xf32>
      %169 = arith.mulf %168, %51 : vector<2x256xf32>
      %170 = arith.addf %165, %169 : vector<2x256xf32>
      %171 = vector.broadcast %167 : f32 to vector<2x256xf32>
      %172 = arith.mulf %171, %54 : vector<2x256xf32>
      %173 = arith.addf %170, %172 : vector<2x256xf32>
      %c13 = arith.constant 13 : index
      %174 = memref.load %arg3[%c13] : memref<98xf32, #tpu.memory_space<smem>>
      %c62 = arith.constant 62 : index
      %175 = memref.load %arg3[%c62] : memref<98xf32, #tpu.memory_space<smem>>
      %176 = vector.broadcast %174 : f32 to vector<2x256xf32>
      %177 = arith.mulf %176, %58 : vector<2x256xf32>
      %178 = arith.addf %173, %177 : vector<2x256xf32>
      %179 = vector.broadcast %175 : f32 to vector<2x256xf32>
      %180 = arith.mulf %179, %61 : vector<2x256xf32>
      %181 = arith.addf %178, %180 : vector<2x256xf32>
      %182 = vector.extract_strided_slice %19 {offsets = [8, 0], sizes = [1, 256], strides = [1, 1]} : vector<14x256xf32> to vector<1x256xf32>
      %c32_i32 = arith.constant 32 : i32
      %183 = tpu.dynamic_rotate %181 by %c32_i32 dim 1 : vector<2x256xf32>, i32 -> vector<2x256xf32>
      %184 = vector.broadcast %182 : vector<1x256xf32> to vector<2x256xf32>
      %185 = arith.mulf %183, %184 : vector<2x256xf32>
      %186 = arith.addf %124, %185 : vector<2x256xf32>
      %cst_31 = arith.constant 0.000000e+00 : f32
      %187 = vector.broadcast %cst_31 : f32 to vector<2x256xf32>
      %c14 = arith.constant 14 : index
      %188 = memref.load %arg3[%c14] : memref<98xf32, #tpu.memory_space<smem>>
      %c63 = arith.constant 63 : index
      %189 = memref.load %arg3[%c63] : memref<98xf32, #tpu.memory_space<smem>>
      %190 = vector.broadcast %188 : f32 to vector<2x256xf32>
      %191 = arith.mulf %190, %23 : vector<2x256xf32>
      %192 = arith.addf %187, %191 : vector<2x256xf32>
      %193 = vector.broadcast %189 : f32 to vector<2x256xf32>
      %194 = arith.mulf %193, %26 : vector<2x256xf32>
      %195 = arith.addf %192, %194 : vector<2x256xf32>
      %c15 = arith.constant 15 : index
      %196 = memref.load %arg3[%c15] : memref<98xf32, #tpu.memory_space<smem>>
      %c64 = arith.constant 64 : index
      %197 = memref.load %arg3[%c64] : memref<98xf32, #tpu.memory_space<smem>>
      %198 = vector.broadcast %196 : f32 to vector<2x256xf32>
      %199 = arith.mulf %198, %30 : vector<2x256xf32>
      %200 = arith.addf %195, %199 : vector<2x256xf32>
      %201 = vector.broadcast %197 : f32 to vector<2x256xf32>
      %202 = arith.mulf %201, %33 : vector<2x256xf32>
      %203 = arith.addf %200, %202 : vector<2x256xf32>
      %c16 = arith.constant 16 : index
      %204 = memref.load %arg3[%c16] : memref<98xf32, #tpu.memory_space<smem>>
      %c65 = arith.constant 65 : index
      %205 = memref.load %arg3[%c65] : memref<98xf32, #tpu.memory_space<smem>>
      %206 = vector.broadcast %204 : f32 to vector<2x256xf32>
      %207 = arith.mulf %206, %37 : vector<2x256xf32>
      %208 = arith.addf %203, %207 : vector<2x256xf32>
      %209 = vector.broadcast %205 : f32 to vector<2x256xf32>
      %210 = arith.mulf %209, %40 : vector<2x256xf32>
      %211 = arith.addf %208, %210 : vector<2x256xf32>
      %c17 = arith.constant 17 : index
      %212 = memref.load %arg3[%c17] : memref<98xf32, #tpu.memory_space<smem>>
      %c66 = arith.constant 66 : index
      %213 = memref.load %arg3[%c66] : memref<98xf32, #tpu.memory_space<smem>>
      %214 = vector.broadcast %212 : f32 to vector<2x256xf32>
      %215 = arith.mulf %214, %17 : vector<2x256xf32>
      %216 = arith.addf %211, %215 : vector<2x256xf32>
      %217 = vector.broadcast %213 : f32 to vector<2x256xf32>
      %218 = arith.mulf %217, %18 : vector<2x256xf32>
      %219 = arith.addf %216, %218 : vector<2x256xf32>
      %c18 = arith.constant 18 : index
      %220 = memref.load %arg3[%c18] : memref<98xf32, #tpu.memory_space<smem>>
      %c67 = arith.constant 67 : index
      %221 = memref.load %arg3[%c67] : memref<98xf32, #tpu.memory_space<smem>>
      %222 = vector.broadcast %220 : f32 to vector<2x256xf32>
      %223 = arith.mulf %222, %44 : vector<2x256xf32>
      %224 = arith.addf %219, %223 : vector<2x256xf32>
      %225 = vector.broadcast %221 : f32 to vector<2x256xf32>
      %226 = arith.mulf %225, %47 : vector<2x256xf32>
      %227 = arith.addf %224, %226 : vector<2x256xf32>
      %c19 = arith.constant 19 : index
      %228 = memref.load %arg3[%c19] : memref<98xf32, #tpu.memory_space<smem>>
      %c68 = arith.constant 68 : index
      %229 = memref.load %arg3[%c68] : memref<98xf32, #tpu.memory_space<smem>>
      %230 = vector.broadcast %228 : f32 to vector<2x256xf32>
      %231 = arith.mulf %230, %51 : vector<2x256xf32>
      %232 = arith.addf %227, %231 : vector<2x256xf32>
      %233 = vector.broadcast %229 : f32 to vector<2x256xf32>
      %234 = arith.mulf %233, %54 : vector<2x256xf32>
      %235 = arith.addf %232, %234 : vector<2x256xf32>
      %c20 = arith.constant 20 : index
      %236 = memref.load %arg3[%c20] : memref<98xf32, #tpu.memory_space<smem>>
      %c69 = arith.constant 69 : index
      %237 = memref.load %arg3[%c69] : memref<98xf32, #tpu.memory_space<smem>>
      %238 = vector.broadcast %236 : f32 to vector<2x256xf32>
      %239 = arith.mulf %238, %58 : vector<2x256xf32>
      %240 = arith.addf %235, %239 : vector<2x256xf32>
      %241 = vector.broadcast %237 : f32 to vector<2x256xf32>
      %242 = arith.mulf %241, %61 : vector<2x256xf32>
      %243 = arith.addf %240, %242 : vector<2x256xf32>
      %244 = vector.extract_strided_slice %19 {offsets = [9, 0], sizes = [1, 256], strides = [1, 1]} : vector<14x256xf32> to vector<1x256xf32>
      %c16_i32 = arith.constant 16 : i32
      %245 = tpu.dynamic_rotate %243 by %c16_i32 dim 1 : vector<2x256xf32>, i32 -> vector<2x256xf32>
      %246 = vector.broadcast %244 : vector<1x256xf32> to vector<2x256xf32>
      %247 = arith.mulf %245, %246 : vector<2x256xf32>
      %248 = arith.addf %186, %247 : vector<2x256xf32>
      %cst_32 = arith.constant 0.000000e+00 : f32
      %249 = vector.broadcast %cst_32 : f32 to vector<2x256xf32>
      %c21 = arith.constant 21 : index
      %250 = memref.load %arg3[%c21] : memref<98xf32, #tpu.memory_space<smem>>
      %c70 = arith.constant 70 : index
      %251 = memref.load %arg3[%c70] : memref<98xf32, #tpu.memory_space<smem>>
      %252 = vector.broadcast %250 : f32 to vector<2x256xf32>
      %253 = arith.mulf %252, %23 : vector<2x256xf32>
      %254 = arith.addf %249, %253 : vector<2x256xf32>
      %255 = vector.broadcast %251 : f32 to vector<2x256xf32>
      %256 = arith.mulf %255, %26 : vector<2x256xf32>
      %257 = arith.addf %254, %256 : vector<2x256xf32>
      %c22 = arith.constant 22 : index
      %258 = memref.load %arg3[%c22] : memref<98xf32, #tpu.memory_space<smem>>
      %c71 = arith.constant 71 : index
      %259 = memref.load %arg3[%c71] : memref<98xf32, #tpu.memory_space<smem>>
      %260 = vector.broadcast %258 : f32 to vector<2x256xf32>
      %261 = arith.mulf %260, %30 : vector<2x256xf32>
      %262 = arith.addf %257, %261 : vector<2x256xf32>
      %263 = vector.broadcast %259 : f32 to vector<2x256xf32>
      %264 = arith.mulf %263, %33 : vector<2x256xf32>
      %265 = arith.addf %262, %264 : vector<2x256xf32>
      %c23 = arith.constant 23 : index
      %266 = memref.load %arg3[%c23] : memref<98xf32, #tpu.memory_space<smem>>
      %c72 = arith.constant 72 : index
      %267 = memref.load %arg3[%c72] : memref<98xf32, #tpu.memory_space<smem>>
      %268 = vector.broadcast %266 : f32 to vector<2x256xf32>
      %269 = arith.mulf %268, %37 : vector<2x256xf32>
      %270 = arith.addf %265, %269 : vector<2x256xf32>
      %271 = vector.broadcast %267 : f32 to vector<2x256xf32>
      %272 = arith.mulf %271, %40 : vector<2x256xf32>
      %273 = arith.addf %270, %272 : vector<2x256xf32>
      %c24 = arith.constant 24 : index
      %274 = memref.load %arg3[%c24] : memref<98xf32, #tpu.memory_space<smem>>
      %c73 = arith.constant 73 : index
      %275 = memref.load %arg3[%c73] : memref<98xf32, #tpu.memory_space<smem>>
      %276 = vector.broadcast %274 : f32 to vector<2x256xf32>
      %277 = arith.mulf %276, %17 : vector<2x256xf32>
      %278 = arith.addf %273, %277 : vector<2x256xf32>
      %279 = vector.broadcast %275 : f32 to vector<2x256xf32>
      %280 = arith.mulf %279, %18 : vector<2x256xf32>
      %281 = arith.addf %278, %280 : vector<2x256xf32>
      %c25 = arith.constant 25 : index
      %282 = memref.load %arg3[%c25] : memref<98xf32, #tpu.memory_space<smem>>
      %c74 = arith.constant 74 : index
      %283 = memref.load %arg3[%c74] : memref<98xf32, #tpu.memory_space<smem>>
      %284 = vector.broadcast %282 : f32 to vector<2x256xf32>
      %285 = arith.mulf %284, %44 : vector<2x256xf32>
      %286 = arith.addf %281, %285 : vector<2x256xf32>
      %287 = vector.broadcast %283 : f32 to vector<2x256xf32>
      %288 = arith.mulf %287, %47 : vector<2x256xf32>
      %289 = arith.addf %286, %288 : vector<2x256xf32>
      %c26 = arith.constant 26 : index
      %290 = memref.load %arg3[%c26] : memref<98xf32, #tpu.memory_space<smem>>
      %c75 = arith.constant 75 : index
      %291 = memref.load %arg3[%c75] : memref<98xf32, #tpu.memory_space<smem>>
      %292 = vector.broadcast %290 : f32 to vector<2x256xf32>
      %293 = arith.mulf %292, %51 : vector<2x256xf32>
      %294 = arith.addf %289, %293 : vector<2x256xf32>
      %295 = vector.broadcast %291 : f32 to vector<2x256xf32>
      %296 = arith.mulf %295, %54 : vector<2x256xf32>
      %297 = arith.addf %294, %296 : vector<2x256xf32>
      %c27 = arith.constant 27 : index
      %298 = memref.load %arg3[%c27] : memref<98xf32, #tpu.memory_space<smem>>
      %c76 = arith.constant 76 : index
      %299 = memref.load %arg3[%c76] : memref<98xf32, #tpu.memory_space<smem>>
      %300 = vector.broadcast %298 : f32 to vector<2x256xf32>
      %301 = arith.mulf %300, %58 : vector<2x256xf32>
      %302 = arith.addf %297, %301 : vector<2x256xf32>
      %303 = vector.broadcast %299 : f32 to vector<2x256xf32>
      %304 = arith.mulf %303, %61 : vector<2x256xf32>
      %305 = arith.addf %302, %304 : vector<2x256xf32>
      %306 = arith.addf %248, %305 : vector<2x256xf32>
      %cst_33 = arith.constant 0.000000e+00 : f32
      %307 = vector.broadcast %cst_33 : f32 to vector<2x256xf32>
      %c28 = arith.constant 28 : index
      %308 = memref.load %arg3[%c28] : memref<98xf32, #tpu.memory_space<smem>>
      %c77 = arith.constant 77 : index
      %309 = memref.load %arg3[%c77] : memref<98xf32, #tpu.memory_space<smem>>
      %310 = vector.broadcast %308 : f32 to vector<2x256xf32>
      %311 = arith.mulf %310, %23 : vector<2x256xf32>
      %312 = arith.addf %307, %311 : vector<2x256xf32>
      %313 = vector.broadcast %309 : f32 to vector<2x256xf32>
      %314 = arith.mulf %313, %26 : vector<2x256xf32>
      %315 = arith.addf %312, %314 : vector<2x256xf32>
      %c29 = arith.constant 29 : index
      %316 = memref.load %arg3[%c29] : memref<98xf32, #tpu.memory_space<smem>>
      %c78 = arith.constant 78 : index
      %317 = memref.load %arg3[%c78] : memref<98xf32, #tpu.memory_space<smem>>
      %318 = vector.broadcast %316 : f32 to vector<2x256xf32>
      %319 = arith.mulf %318, %30 : vector<2x256xf32>
      %320 = arith.addf %315, %319 : vector<2x256xf32>
      %321 = vector.broadcast %317 : f32 to vector<2x256xf32>
      %322 = arith.mulf %321, %33 : vector<2x256xf32>
      %323 = arith.addf %320, %322 : vector<2x256xf32>
      %c30 = arith.constant 30 : index
      %324 = memref.load %arg3[%c30] : memref<98xf32, #tpu.memory_space<smem>>
      %c79 = arith.constant 79 : index
      %325 = memref.load %arg3[%c79] : memref<98xf32, #tpu.memory_space<smem>>
      %326 = vector.broadcast %324 : f32 to vector<2x256xf32>
      %327 = arith.mulf %326, %37 : vector<2x256xf32>
      %328 = arith.addf %323, %327 : vector<2x256xf32>
      %329 = vector.broadcast %325 : f32 to vector<2x256xf32>
      %330 = arith.mulf %329, %40 : vector<2x256xf32>
      %331 = arith.addf %328, %330 : vector<2x256xf32>
      %c31 = arith.constant 31 : index
      %332 = memref.load %arg3[%c31] : memref<98xf32, #tpu.memory_space<smem>>
      %c80 = arith.constant 80 : index
      %333 = memref.load %arg3[%c80] : memref<98xf32, #tpu.memory_space<smem>>
      %334 = vector.broadcast %332 : f32 to vector<2x256xf32>
      %335 = arith.mulf %334, %17 : vector<2x256xf32>
      %336 = arith.addf %331, %335 : vector<2x256xf32>
      %337 = vector.broadcast %333 : f32 to vector<2x256xf32>
      %338 = arith.mulf %337, %18 : vector<2x256xf32>
      %339 = arith.addf %336, %338 : vector<2x256xf32>
      %c32 = arith.constant 32 : index
      %340 = memref.load %arg3[%c32] : memref<98xf32, #tpu.memory_space<smem>>
      %c81 = arith.constant 81 : index
      %341 = memref.load %arg3[%c81] : memref<98xf32, #tpu.memory_space<smem>>
      %342 = vector.broadcast %340 : f32 to vector<2x256xf32>
      %343 = arith.mulf %342, %44 : vector<2x256xf32>
      %344 = arith.addf %339, %343 : vector<2x256xf32>
      %345 = vector.broadcast %341 : f32 to vector<2x256xf32>
      %346 = arith.mulf %345, %47 : vector<2x256xf32>
      %347 = arith.addf %344, %346 : vector<2x256xf32>
      %c33 = arith.constant 33 : index
      %348 = memref.load %arg3[%c33] : memref<98xf32, #tpu.memory_space<smem>>
      %c82 = arith.constant 82 : index
      %349 = memref.load %arg3[%c82] : memref<98xf32, #tpu.memory_space<smem>>
      %350 = vector.broadcast %348 : f32 to vector<2x256xf32>
      %351 = arith.mulf %350, %51 : vector<2x256xf32>
      %352 = arith.addf %347, %351 : vector<2x256xf32>
      %353 = vector.broadcast %349 : f32 to vector<2x256xf32>
      %354 = arith.mulf %353, %54 : vector<2x256xf32>
      %355 = arith.addf %352, %354 : vector<2x256xf32>
      %c34 = arith.constant 34 : index
      %356 = memref.load %arg3[%c34] : memref<98xf32, #tpu.memory_space<smem>>
      %c83 = arith.constant 83 : index
      %357 = memref.load %arg3[%c83] : memref<98xf32, #tpu.memory_space<smem>>
      %358 = vector.broadcast %356 : f32 to vector<2x256xf32>
      %359 = arith.mulf %358, %58 : vector<2x256xf32>
      %360 = arith.addf %355, %359 : vector<2x256xf32>
      %361 = vector.broadcast %357 : f32 to vector<2x256xf32>
      %362 = arith.mulf %361, %61 : vector<2x256xf32>
      %363 = arith.addf %360, %362 : vector<2x256xf32>
      %364 = vector.extract_strided_slice %19 {offsets = [11, 0], sizes = [1, 256], strides = [1, 1]} : vector<14x256xf32> to vector<1x256xf32>
      %c240_i32 = arith.constant 240 : i32
      %365 = tpu.dynamic_rotate %363 by %c240_i32 dim 1 : vector<2x256xf32>, i32 -> vector<2x256xf32>
      %366 = vector.broadcast %364 : vector<1x256xf32> to vector<2x256xf32>
      %367 = arith.mulf %365, %366 : vector<2x256xf32>
      %368 = arith.addf %306, %367 : vector<2x256xf32>
      %cst_34 = arith.constant 0.000000e+00 : f32
      %369 = vector.broadcast %cst_34 : f32 to vector<2x256xf32>
      %c35 = arith.constant 35 : index
      %370 = memref.load %arg3[%c35] : memref<98xf32, #tpu.memory_space<smem>>
      %c84 = arith.constant 84 : index
      %371 = memref.load %arg3[%c84] : memref<98xf32, #tpu.memory_space<smem>>
      %372 = vector.broadcast %370 : f32 to vector<2x256xf32>
      %373 = arith.mulf %372, %23 : vector<2x256xf32>
      %374 = arith.addf %369, %373 : vector<2x256xf32>
      %375 = vector.broadcast %371 : f32 to vector<2x256xf32>
      %376 = arith.mulf %375, %26 : vector<2x256xf32>
      %377 = arith.addf %374, %376 : vector<2x256xf32>
      %c36 = arith.constant 36 : index
      %378 = memref.load %arg3[%c36] : memref<98xf32, #tpu.memory_space<smem>>
      %c85 = arith.constant 85 : index
      %379 = memref.load %arg3[%c85] : memref<98xf32, #tpu.memory_space<smem>>
      %380 = vector.broadcast %378 : f32 to vector<2x256xf32>
      %381 = arith.mulf %380, %30 : vector<2x256xf32>
      %382 = arith.addf %377, %381 : vector<2x256xf32>
      %383 = vector.broadcast %379 : f32 to vector<2x256xf32>
      %384 = arith.mulf %383, %33 : vector<2x256xf32>
      %385 = arith.addf %382, %384 : vector<2x256xf32>
      %c37 = arith.constant 37 : index
      %386 = memref.load %arg3[%c37] : memref<98xf32, #tpu.memory_space<smem>>
      %c86 = arith.constant 86 : index
      %387 = memref.load %arg3[%c86] : memref<98xf32, #tpu.memory_space<smem>>
      %388 = vector.broadcast %386 : f32 to vector<2x256xf32>
      %389 = arith.mulf %388, %37 : vector<2x256xf32>
      %390 = arith.addf %385, %389 : vector<2x256xf32>
      %391 = vector.broadcast %387 : f32 to vector<2x256xf32>
      %392 = arith.mulf %391, %40 : vector<2x256xf32>
      %393 = arith.addf %390, %392 : vector<2x256xf32>
      %c38 = arith.constant 38 : index
      %394 = memref.load %arg3[%c38] : memref<98xf32, #tpu.memory_space<smem>>
      %c87 = arith.constant 87 : index
      %395 = memref.load %arg3[%c87] : memref<98xf32, #tpu.memory_space<smem>>
      %396 = vector.broadcast %394 : f32 to vector<2x256xf32>
      %397 = arith.mulf %396, %17 : vector<2x256xf32>
      %398 = arith.addf %393, %397 : vector<2x256xf32>
      %399 = vector.broadcast %395 : f32 to vector<2x256xf32>
      %400 = arith.mulf %399, %18 : vector<2x256xf32>
      %401 = arith.addf %398, %400 : vector<2x256xf32>
      %c39 = arith.constant 39 : index
      %402 = memref.load %arg3[%c39] : memref<98xf32, #tpu.memory_space<smem>>
      %c88 = arith.constant 88 : index
      %403 = memref.load %arg3[%c88] : memref<98xf32, #tpu.memory_space<smem>>
      %404 = vector.broadcast %402 : f32 to vector<2x256xf32>
      %405 = arith.mulf %404, %44 : vector<2x256xf32>
      %406 = arith.addf %401, %405 : vector<2x256xf32>
      %407 = vector.broadcast %403 : f32 to vector<2x256xf32>
      %408 = arith.mulf %407, %47 : vector<2x256xf32>
      %409 = arith.addf %406, %408 : vector<2x256xf32>
      %c40 = arith.constant 40 : index
      %410 = memref.load %arg3[%c40] : memref<98xf32, #tpu.memory_space<smem>>
      %c89 = arith.constant 89 : index
      %411 = memref.load %arg3[%c89] : memref<98xf32, #tpu.memory_space<smem>>
      %412 = vector.broadcast %410 : f32 to vector<2x256xf32>
      %413 = arith.mulf %412, %51 : vector<2x256xf32>
      %414 = arith.addf %409, %413 : vector<2x256xf32>
      %415 = vector.broadcast %411 : f32 to vector<2x256xf32>
      %416 = arith.mulf %415, %54 : vector<2x256xf32>
      %417 = arith.addf %414, %416 : vector<2x256xf32>
      %c41 = arith.constant 41 : index
      %418 = memref.load %arg3[%c41] : memref<98xf32, #tpu.memory_space<smem>>
      %c90 = arith.constant 90 : index
      %419 = memref.load %arg3[%c90] : memref<98xf32, #tpu.memory_space<smem>>
      %420 = vector.broadcast %418 : f32 to vector<2x256xf32>
      %421 = arith.mulf %420, %58 : vector<2x256xf32>
      %422 = arith.addf %417, %421 : vector<2x256xf32>
      %423 = vector.broadcast %419 : f32 to vector<2x256xf32>
      %424 = arith.mulf %423, %61 : vector<2x256xf32>
      %425 = arith.addf %422, %424 : vector<2x256xf32>
      %426 = vector.extract_strided_slice %19 {offsets = [12, 0], sizes = [1, 256], strides = [1, 1]} : vector<14x256xf32> to vector<1x256xf32>
      %c224_i32 = arith.constant 224 : i32
      %427 = tpu.dynamic_rotate %425 by %c224_i32 dim 1 : vector<2x256xf32>, i32 -> vector<2x256xf32>
      %428 = vector.broadcast %426 : vector<1x256xf32> to vector<2x256xf32>
      %429 = arith.mulf %427, %428 : vector<2x256xf32>
      %430 = arith.addf %368, %429 : vector<2x256xf32>
      %cst_35 = arith.constant 0.000000e+00 : f32
      %431 = vector.broadcast %cst_35 : f32 to vector<2x256xf32>
      %c42 = arith.constant 42 : index
      %432 = memref.load %arg3[%c42] : memref<98xf32, #tpu.memory_space<smem>>
      %c91 = arith.constant 91 : index
      %433 = memref.load %arg3[%c91] : memref<98xf32, #tpu.memory_space<smem>>
      %434 = vector.broadcast %432 : f32 to vector<2x256xf32>
      %435 = arith.mulf %434, %23 : vector<2x256xf32>
      %436 = arith.addf %431, %435 : vector<2x256xf32>
      %437 = vector.broadcast %433 : f32 to vector<2x256xf32>
      %438 = arith.mulf %437, %26 : vector<2x256xf32>
      %439 = arith.addf %436, %438 : vector<2x256xf32>
      %c43 = arith.constant 43 : index
      %440 = memref.load %arg3[%c43] : memref<98xf32, #tpu.memory_space<smem>>
      %c92 = arith.constant 92 : index
      %441 = memref.load %arg3[%c92] : memref<98xf32, #tpu.memory_space<smem>>
      %442 = vector.broadcast %440 : f32 to vector<2x256xf32>
      %443 = arith.mulf %442, %30 : vector<2x256xf32>
      %444 = arith.addf %439, %443 : vector<2x256xf32>
      %445 = vector.broadcast %441 : f32 to vector<2x256xf32>
      %446 = arith.mulf %445, %33 : vector<2x256xf32>
      %447 = arith.addf %444, %446 : vector<2x256xf32>
      %c44 = arith.constant 44 : index
      %448 = memref.load %arg3[%c44] : memref<98xf32, #tpu.memory_space<smem>>
      %c93 = arith.constant 93 : index
      %449 = memref.load %arg3[%c93] : memref<98xf32, #tpu.memory_space<smem>>
      %450 = vector.broadcast %448 : f32 to vector<2x256xf32>
      %451 = arith.mulf %450, %37 : vector<2x256xf32>
      %452 = arith.addf %447, %451 : vector<2x256xf32>
      %453 = vector.broadcast %449 : f32 to vector<2x256xf32>
      %454 = arith.mulf %453, %40 : vector<2x256xf32>
      %455 = arith.addf %452, %454 : vector<2x256xf32>
      %c45 = arith.constant 45 : index
      %456 = memref.load %arg3[%c45] : memref<98xf32, #tpu.memory_space<smem>>
      %c94 = arith.constant 94 : index
      %457 = memref.load %arg3[%c94] : memref<98xf32, #tpu.memory_space<smem>>
      %458 = vector.broadcast %456 : f32 to vector<2x256xf32>
      %459 = arith.mulf %458, %17 : vector<2x256xf32>
      %460 = arith.addf %455, %459 : vector<2x256xf32>
      %461 = vector.broadcast %457 : f32 to vector<2x256xf32>
      %462 = arith.mulf %461, %18 : vector<2x256xf32>
      %463 = arith.addf %460, %462 : vector<2x256xf32>
      %c46 = arith.constant 46 : index
      %464 = memref.load %arg3[%c46] : memref<98xf32, #tpu.memory_space<smem>>
      %c95 = arith.constant 95 : index
      %465 = memref.load %arg3[%c95] : memref<98xf32, #tpu.memory_space<smem>>
      %466 = vector.broadcast %464 : f32 to vector<2x256xf32>
      %467 = arith.mulf %466, %44 : vector<2x256xf32>
      %468 = arith.addf %463, %467 : vector<2x256xf32>
      %469 = vector.broadcast %465 : f32 to vector<2x256xf32>
      %470 = arith.mulf %469, %47 : vector<2x256xf32>
      %471 = arith.addf %468, %470 : vector<2x256xf32>
      %c47 = arith.constant 47 : index
      %472 = memref.load %arg3[%c47] : memref<98xf32, #tpu.memory_space<smem>>
      %c96 = arith.constant 96 : index
      %473 = memref.load %arg3[%c96] : memref<98xf32, #tpu.memory_space<smem>>
      %474 = vector.broadcast %472 : f32 to vector<2x256xf32>
      %475 = arith.mulf %474, %51 : vector<2x256xf32>
      %476 = arith.addf %471, %475 : vector<2x256xf32>
      %477 = vector.broadcast %473 : f32 to vector<2x256xf32>
      %478 = arith.mulf %477, %54 : vector<2x256xf32>
      %479 = arith.addf %476, %478 : vector<2x256xf32>
      %c48 = arith.constant 48 : index
      %480 = memref.load %arg3[%c48] : memref<98xf32, #tpu.memory_space<smem>>
      %c97 = arith.constant 97 : index
      %481 = memref.load %arg3[%c97] : memref<98xf32, #tpu.memory_space<smem>>
      %482 = vector.broadcast %480 : f32 to vector<2x256xf32>
      %483 = arith.mulf %482, %58 : vector<2x256xf32>
      %484 = arith.addf %479, %483 : vector<2x256xf32>
      %485 = vector.broadcast %481 : f32 to vector<2x256xf32>
      %486 = arith.mulf %485, %61 : vector<2x256xf32>
      %487 = arith.addf %484, %486 : vector<2x256xf32>
      %488 = vector.extract_strided_slice %19 {offsets = [13, 0], sizes = [1, 256], strides = [1, 1]} : vector<14x256xf32> to vector<1x256xf32>
      %c208_i32 = arith.constant 208 : i32
      %489 = tpu.dynamic_rotate %487 by %c208_i32 dim 1 : vector<2x256xf32>, i32 -> vector<2x256xf32>
      %490 = vector.broadcast %488 : vector<1x256xf32> to vector<2x256xf32>
      %491 = arith.mulf %489, %490 : vector<2x256xf32>
      %492 = arith.addf %430, %491 : vector<2x256xf32>
      %493 = arith.negf %492 : vector<2x256xf32>
      %494 = math.exp %493 : vector<2x256xf32>
      %cst_36 = arith.constant 1.000000e+00 : f32
      %495 = vector.broadcast %cst_36 : f32 to vector<2x256xf32>
      %496 = arith.addf %495, %494 : vector<2x256xf32>
      %497 = arith.divf %495, %496 : vector<2x256xf32>
      %c0_37 = arith.constant 0 : index
      %c0_38 = arith.constant 0 : index
      %498 = vector.load %arg5[%c0_37, %c0_38] : memref<2x256xf32, #tpu.memory_space<vmem>>, vector<2x256xf32>
      tpu.vector_store %arg5[%c0_37, %c0_38], %497 {strides = array<i32>} : memref<2x256xf32, #tpu.memory_space<vmem>>, vector<2x256xf32>,
    } else {
    }
    return
  }
  func.func @transform_0(%arg0: i32, %arg1: i32) -> (i32, i32, i32) {
    %c0_i32 = arith.constant 0 : i32
    %c0_i32_0 = arith.constant 0 : i32
    return %arg0, %arg1, %c0_i32 : i32, i32, i32
  }
  func.func @transform_1(%arg0: i32, %arg1: i32) -> i32 {
    %c0_i32 = arith.constant 0 : i32
    %c0_i32_0 = arith.constant 0 : i32
    return %c0_i32 : i32
  }
  func.func @transform_2(%arg0: i32, %arg1: i32) -> (i32, i32) {
    %c0_i32 = arith.constant 0 : i32
    %c0_i32_0 = arith.constant 0 : i32
    %c0_i32_1 = arith.constant 0 : i32
    return %c0_i32, %c0_i32_0 : i32, i32
  }
  func.func @transform_3(%arg0: i32, %arg1: i32) -> (i32, i32) {
    %c0_i32 = arith.constant 0 : i32
    %c0_i32_0 = arith.constant 0 : i32
    return %arg0, %c0_i32 : i32, i32
  }
}

</mosaic_0001>

<llo_original>
// kernel: tpu_custom_call.1
$region0: #{tpu_custom_call.1}
  #allocation0 [shape = 'u32[]', space=smem, size = 0x4, offset = 0x4, fixed_abs, tag = 'smem constant byte address 0x4 - core index']
  #allocation1 [shape = 'u32[72,128]{1,0:T(1,128)}', space=vmem, size = 0x9000, scoped, tag = 'internal scratch']
  #allocation2 [shape = 'f32[2,256]{1,0:T(2,128)}', space=vmem, size = 0x800, scoped, tag = 'scratch operand']
  #allocation3 [shape = 'f32[2,256]{1,0:T(2,128)}', space=vmem, size = 0x800, scoped, tag = 'scratch operand']
  %s0 = inlined_call_operand.hbm [shape: f32[2,4,256], index: 0, kind: input, shape index: {}]
  %s1 = inlined_call_operand.hbm [shape: f32[98], index: 1, kind: input, shape index: {}]
  %s2 = inlined_call_operand.hbm [shape: f32[14,256], index: 2, kind: input, shape index: {}]
  %s3 = inlined_call_operand.hbm [shape: f32[2,256], index: 3, kind: output, shape index: {}]
  %s4 = sld [smem:[#allocation0]]
  $region42: #{tpu_custom_call.1} parent=0
    _
  %s6 = ssub.s32 1, %s4
  %s7 = scalar_select 0, %s6, %s4
  $region1: #{tpu_custom_call.1} parent=0
    #allocation4 [shape = 'u8[8192]{0}', space=vmem, size = 0x2000, scoped, tag = 'input window, operand 0, single buffered']
    #allocation5 [shape = 's32[1]{0}', space=sflag, size = 0x4, scoped, tag = 'scoped memory for tpu_custom_call.1']
    #allocation6 [shape = 's32[1]{0}', space=sflag, size = 0x4, scoped, tag = 'scoped memory for tpu_custom_call.1']
    #allocation7 [shape = 's32[1]{0}', space=sflag, size = 0x4, scoped, tag = 'scoped memory for tpu_custom_call.1']
    #allocation8 [shape = 'u8[512]{0}', space=smem, size = 0x200, scoped, tag = 'input window, operand 1, single buffered']
    #allocation9 [shape = 'u8[16384]{0}', space=vmem, size = 0x4000, scoped, tag = 'input window, operand 2, single buffered']
    #allocation10 [shape = 's32[1]{0}', space=sflag, size = 0x4, scoped, tag = 'scoped memory for tpu_custom_call.1']
    #allocation11 [shape = 'u8[2048]{0}', space=vmem, size = 0x800, scoped, tag = 'output window, operand 0, single buffered']
    %8 = vsyncpa [#allocation5], 0
    %9 = vsyncpa [#allocation7], 0
    %10 = vsyncpa [#allocation10], 0
    %11 = vsyncpa [#allocation6], 0
    // Predicated region
    $region2: #{tpu_custom_call.1} parent=1 // pred_check
      _
    $region3: #{tpu_custom_call.1} parent=1 // pred_check_branch
      %13 = sbr.rel (0) target = $region5
    $region4: #{tpu_custom_call.1} parent=1 // pred_region
      %15 = vsyncadd [#allocation5], 0
      %s16 = sshll.u32 %s0, 4
      %s17 = int_to_ptr.hbm [resolvable:$true] %s16
      %s18 = sshll.u32 [#allocation4], 4
      %s19 = int_to_ptr.vmem [resolvable:$true] %s18
      %24 = dma.hbm_to_vmem [thread:$0]  %s17, 256, %s19, [#allocation5], 128, 128, 8
    $region5: #{tpu_custom_call.1} parent=1 // pred_fallthru
      _
    // Predicated region
    $region6: #{tpu_custom_call.1} parent=1 // pred_check
      _
    $region7: #{tpu_custom_call.1} parent=1 // pred_check_branch
      %26 = sbr.rel (0) target = $region9
    $region8: #{tpu_custom_call.1} parent=1 // pred_region
      %28 = vsyncadd [#allocation7], 0
      %s30 = sshll.u32 %s1, 4
      %s31 = int_to_ptr.hbm [resolvable:$true] %s30
      %33 = dma.hbm_to_smem %s31, 16, [#allocation8], [#allocation7]
    $region9: #{tpu_custom_call.1} parent=1 // pred_fallthru
      _
    // Predicated region
    $region10: #{tpu_custom_call.1} parent=1 // pred_check
      _
    $region11: #{tpu_custom_call.1} parent=1 // pred_check_branch
      %35 = sbr.rel (0) target = $region13
    $region12: #{tpu_custom_call.1} parent=1 // pred_region
      %37 = vsyncadd [#allocation10], 0
      %s38 = sshll.u32 %s2, 4
      %s39 = int_to_ptr.hbm [resolvable:$true] %s38
      %s40 = sshll.u32 [#allocation9], 4
      %s41 = int_to_ptr.vmem [resolvable:$true] %s40
      %46 = dma.hbm_to_vmem [thread:$0]  %s39, 512, %s41, [#allocation10], 256, 256, 16
    $region13: #{tpu_custom_call.1} parent=1 // pred_fallthru
      _
    // Predicated region
    $region14: #{tpu_custom_call.1} parent=1 // pred_check
      _
    $region15: #{tpu_custom_call.1} parent=1 // pred_check_branch
      %48 = sbr.rel (0) target = $region17
    $region16: #{tpu_custom_call.1} parent=1 // pred_region
      %50 = dma.done [#allocation5], 256
    $region17: #{tpu_custom_call.1} parent=1 // pred_fallthru
      _
    // Predicated region
    $region18: #{tpu_custom_call.1} parent=1 // pred_check
      _
    $region19: #{tpu_custom_call.1} parent=1 // pred_check_branch
      %52 = sbr.rel (0) target = $region21
    $region20: #{tpu_custom_call.1} parent=1 // pred_region
      %54 = dma.done [#allocation7], 16
    $region21: #{tpu_custom_call.1} parent=1 // pred_fallthru
      _
    // Predicated region
    $region22: #{tpu_custom_call.1} parent=1 // pred_check
      _
    $region23: #{tpu_custom_call.1} parent=1 // pred_check_branch
      %56 = sbr.rel (0) target = $region25
    $region24: #{tpu_custom_call.1} parent=1 // pred_region
      %58 = dma.done [#allocation10], 512
    $region25: #{tpu_custom_call.1} parent=1 // pred_fallthru
      _
    %59 = sfence
    %p60 = scmp.eq.s32.totalorder 0, 0
    // Predicated region
    $region26: #{tpu_custom_call.1} parent=1 // pred_check
      %p61 = pneg %p60
    $region27: #{tpu_custom_call.1} parent=1 // pred_check_branch
      %63 = sbr.rel (%p61) target = $region29
    $region28: #{tpu_custom_call.1} parent=1 // pred_region
      %64 = vst [vmem:[#allocation2] sm:$0xf] 0.0
      %65 = vst [vmem:[#allocation3] sm:$0xf] -inf
    $region29: #{tpu_custom_call.1} parent=1 // pred_fallthru
      _
    %v66 = vld [vmem:[#allocation4] sm:$0xff]
    %v67 = vld [vmem:[#allocation4 + $0x8] sm:$0xff]
    %v68 = vld [vmem:[#allocation2] sm:$0xf]
    %71 = vst [vmem:[#allocation1] ss:$2 sm:$0xff] %v66
    %v72 = vld.sshfl [vmem:[#allocation1] sm:$0xff pattern:$0x75316420]
    %v73 = vld.sshfl [vmem:[#allocation1 + $0x8] sm:$0xff pattern:$0x75316420]
    %s74 = scalar_lea.vmem [#allocation1], 16
    %75 = vst [vmem:[%s74] ss:$2 sm:$0xff] %v67
    %v76 = vld.sshfl [vmem:[#allocation1 + $0x10] sm:$0xff pattern:$0x75316420]
    %v77 = vld.sshfl [vmem:[#allocation1 + $0x18] sm:$0xff pattern:$0x75316420]
    %vm82 = vcmask 1043456
    %v83 = vsel %vm82, %v72, 0.0
    %v84 = vrot.slane %v83, 4
    %v85 = vadd.f32 %v83, %v84
    %v86 = vrot.slane %v85, 2
    %v87 = vadd.f32 %v85, %v86
    %v88 = vrot.slane %v87, 1
    %v89 = vadd.f32 %v87, %v88
    %v90 = vsel %vm82, %v73, 0.0
    %v91 = vrot.slane %v90, 4
    %v92 = vadd.f32 %v90, %v91
    %v93 = vrot.slane %v92, 2
    %v94 = vadd.f32 %v92, %v93
    %v95 = vrot.slane %v94, 1
    %v96 = vadd.f32 %v94, %v95
    %v97 = vsel %vm82, %v76, 0.0
    %v98 = vrot.slane %v97, 4
    %v99 = vadd.f32 %v97, %v98
    %v100 = vrot.slane %v99, 2
    %v101 = vadd.f32 %v99, %v100
    %v102 = vrot.slane %v101, 1
    %v103 = vadd.f32 %v101, %v102
    %v104 = vsel %vm82, %v77, 0.0
    %v105 = vrot.slane %v104, 4
    %v106 = vadd.f32 %v104, %v105
    %v107 = vrot.slane %v106, 2
    %v108 = vadd.f32 %v106, %v107
    %v109 = vrot.slane %v108, 1
    %v110 = vadd.f32 %v108, %v109
    %v115 = vrot.slane %v96, 6
    %v116 = vrot.slane %v110, 6
    %vm117 = vcmask 1041408
    %v118 = vsel %vm117, %v89, %v115
    %v119 = vsel %vm117, %v103, %v116
    %vm120 = vcmask 1044484
    %v121 = vsel %vm120, %v118, %v118
    %vm122 = vcmask 1046534
    %v123 = vsel %vm122, %v118, %v121
    %v124 = vrot.slane %v119, 7
    %vm125 = vcmask 1041409
    %v126 = vsel %vm125, %v124, %v123
    %vm127 = vcmask 1043459
    %v128 = vsel %vm127, %v124, %v126
    %vm129 = vcmask 1045509
    %v130 = vsel %vm129, %v124, %v128
    %vm131 = vcmask 1047559
    %v132 = vsel %vm131, %v124, %v130
    %v134 = vadd.f32 %v68, %v132
    %135 = vst [vmem:[#allocation2] sm:$0xf] %v134
    %v136 = vld [vmem:[#allocation3] sm:$0xf]
    %137 = vst [vmem:[#allocation1] ss:$2 sm:$0xff] %v66
    %v138 = vld.sshfl [vmem:[#allocation1] sm:$0xff pattern:$0x75316420]
    %v139 = vld.sshfl [vmem:[#allocation1 + $0x8] sm:$0xff pattern:$0x75316420]
    %s140 = scalar_lea.vmem [#allocation1], 16
    %141 = vst [vmem:[%s140] ss:$2 sm:$0xff] %v67
    %v142 = vld.sshfl [vmem:[#allocation1 + $0x10] sm:$0xff pattern:$0x75316420]
    %v143 = vld.sshfl [vmem:[#allocation1 + $0x18] sm:$0xff pattern:$0x75316420]
    %v148 = vsel %vm82, %v138, -inf
    %v149 = vrot.slane %v148, 4
    %v150 = vmax.f32 %v148, %v149
    %v151 = vrot.slane %v150, 2
    %v152 = vmax.f32 %v150, %v151
    %v153 = vrot.slane %v152, 1
    %v154 = vmax.f32 %v152, %v153
    %v155 = vsel %vm82, %v139, -inf
    %v156 = vrot.slane %v155, 4
    %v157 = vmax.f32 %v155, %v156
    %v158 = vrot.slane %v157, 2
    %v159 = vmax.f32 %v157, %v158
    %v160 = vrot.slane %v159, 1
    %v161 = vmax.f32 %v159, %v160
    %v162 = vsel %vm82, %v142, -inf
    %v163 = vrot.slane %v162, 4
    %v164 = vmax.f32 %v162, %v163
    %v165 = vrot.slane %v164, 2
    %v166 = vmax.f32 %v164, %v165
    %v167 = vrot.slane %v166, 1
    %v168 = vmax.f32 %v166, %v167
    %v169 = vsel %vm82, %v143, -inf
    %v170 = vrot.slane %v169, 4
    %v171 = vmax.f32 %v169, %v170
    %v172 = vrot.slane %v171, 2
    %v173 = vmax.f32 %v171, %v172
    %v174 = vrot.slane %v173, 1
    %v175 = vmax.f32 %v173, %v174
    %v180 = vrot.slane %v161, 6
    %v181 = vrot.slane %v175, 6
    %v182 = vsel %vm117, %v154, %v180
    %v183 = vsel %vm117, %v168, %v181
    %v184 = vsel %vm120, %v182, %v182
    %v185 = vsel %vm122, %v182, %v184
    %v186 = vrot.slane %v183, 7
    %v187 = vsel %vm125, %v186, %v185
    %v188 = vsel %vm127, %v186, %v187
    %v189 = vsel %vm129, %v186, %v188
    %v190 = vsel %vm131, %v186, %v189
    %v192 = vmax.f32 %v136, %v190
    %193 = vst [vmem:[#allocation3] sm:$0xf] %v192
    // Predicated region
    $region30: #{tpu_custom_call.1} parent=1 // pred_check
      %p194 = pneg %p60
    $region31: #{tpu_custom_call.1} parent=1 // pred_check_branch
      %196 = sbr.rel (%p194) target = $region33
    $region32: #{tpu_custom_call.1} parent=1 // pred_region
      %v197 = vld [vmem:[#allocation2] sm:$0xf]
      %v198 = vmul.f32 %v197, 0.25
      %v199 = vld [vmem:[#allocation3] sm:$0xf]
      %v200 = vld [vmem:[#allocation9] sm:$0xff]
      %v201 = vld [vmem:[#allocation9 + $0x8] sm:$0xff]
      %v202 = vld [vmem:[#allocation9 + $0x10] sm:$0x3f]
      %v203 = vld [vmem:[#allocation9 + $0x18] sm:$0x3f]
      %205 = vst [vmem:[#allocation1] ss:$4 sm:$0xff] %v198
      %v206 = vld.sshfl [vmem:[#allocation1] sm:$0xff pattern:$0x73625140]
      %v207 = vld.sshfl [vmem:[#allocation1 + $0x8] sm:$0xff pattern:$0x73625140]
      %210 = vrot.lane.b32.xlu0 %v206, 3
      %v211 = vpop.permute.xlu0 %210
      %212 = vrot.lane.b32.xlu0 %v207, 3
      %v213 = vpop.permute.xlu0 %212
      %v214 = vlaneseq
      %v215 = vand.u32 %v214, 127
      %vm216 = vcmp.lt.s32.totalorder %v215, 3
      %v217 = vsel %vm216, %v211, %v213
      %v218 = vsel %vm216, %v213, %v211
      %v219 = vperm.slane %v200, 0
      %v220 = vperm.slane %v201, 0
      %v221 = vmul.f32 %v218, %v219
      %v222 = vmul.f32 %v217, %v220
      %224 = vst [vmem:[#allocation1] ss:$4 sm:$0xff] %v199
      %v225 = vld.sshfl [vmem:[#allocation1] sm:$0xff pattern:$0x73625140]
      %v226 = vld.sshfl [vmem:[#allocation1 + $0x8] sm:$0xff pattern:$0x73625140]
      %229 = vrot.lane.b32.xlu0 %v225, 3
      %v230 = vpop.permute.xlu0 %229
      %231 = vrot.lane.b32.xlu0 %v226, 3
      %v232 = vpop.permute.xlu0 %231
      %v233 = vsel %vm216, %v230, %v232
      %v234 = vsel %vm216, %v232, %v230
      %v235 = vmul.f32 %v234, %v219
      %v236 = vmul.f32 %v233, %v220
      %237 = vst [vmem:[#allocation1] ss:$4 sm:$0xff] %v198
      %v238 = vld.sshfl [vmem:[#allocation1] sm:$0xff pattern:$0x73625140]
      %v239 = vld.sshfl [vmem:[#allocation1 + $0x8] sm:$0xff pattern:$0x73625140]
      %242 = vrot.lane.b32.xlu0 %v238, 2
      %v243 = vpop.permute.xlu0 %242
      %244 = vrot.lane.b32.xlu0 %v239, 2
      %v245 = vpop.permute.xlu0 %244
      %vm246 = vcmp.lt.s32.totalorder %v215, 2
      %v247 = vsel %vm246, %v243, %v245
      %v248 = vsel %vm246, %v245, %v243
      %v249 = vperm.slane %v200, 1
      %v250 = vperm.slane %v201, 1
      %v251 = vmul.f32 %v248, %v249
      %v252 = vmul.f32 %v247, %v250
      %253 = vst [vmem:[#allocation1] ss:$4 sm:$0xff] %v199
      %v254 = vld.sshfl [vmem:[#allocation1] sm:$0xff pattern:$0x73625140]
      %v255 = vld.sshfl [vmem:[#allocation1 + $0x8] sm:$0xff pattern:$0x73625140]
      %258 = vrot.lane.b32.xlu0 %v254, 2
      %v259 = vpop.permute.xlu0 %258
      %260 = vrot.lane.b32.xlu0 %v255, 2
      %v261 = vpop.permute.xlu0 %260
      %v262 = vsel %vm246, %v259, %v261
      %v263 = vsel %vm246, %v261, %v259
      %v264 = vmul.f32 %v263, %v249
      %v265 = vmul.f32 %v262, %v250
      %266 = vst [vmem:[#allocation1] ss:$4 sm:$0xff] %v198
      %v267 = vld.sshfl [vmem:[#allocation1] sm:$0xff pattern:$0x73625140]
      %v268 = vld.sshfl [vmem:[#allocation1 + $0x8] sm:$0xff pattern:$0x73625140]
      %271 = vrot.lane.b32.xlu0 %v267, 1
      %v272 = vpop.permute.xlu0 %271
      %273 = vrot.lane.b32.xlu0 %v268, 1
      %v274 = vpop.permute.xlu0 %273
      %vm275 = vcmp.lt.s32.totalorder %v215, 1
      %v276 = vsel %vm275, %v272, %v274
      %v277 = vsel %vm275, %v274, %v272
      %v278 = vperm.slane %v200, 2
      %v279 = vperm.slane %v201, 2
      %v280 = vmul.f32 %v277, %v278
      %v281 = vmul.f32 %v276, %v279
      %282 = vst [vmem:[#allocation1] ss:$4 sm:$0xff] %v199
      %v283 = vld.sshfl [vmem:[#allocation1] sm:$0xff pattern:$0x73625140]
      %v284 = vld.sshfl [vmem:[#allocation1 + $0x8] sm:$0xff pattern:$0x73625140]
      %287 = vrot.lane.b32.xlu0 %v283, 1
      %v288 = vpop.permute.xlu0 %287
      %289 = vrot.lane.b32.xlu0 %v284, 1
      %v290 = vpop.permute.xlu0 %289
      %v291 = vsel %vm275, %v288, %v290
      %v292 = vsel %vm275, %v290, %v288
      %v293 = vmul.f32 %v292, %v278
      %v294 = vmul.f32 %v291, %v279
      %295 = vst [vmem:[#allocation1] ss:$4 sm:$0xff] %v198
      %v296 = vld.sshfl [vmem:[#allocation1] sm:$0xff pattern:$0x73625140]
      %v297 = vld.sshfl [vmem:[#allocation1 + $0x8] sm:$0xff pattern:$0x73625140]
      %300 = vrot.lane.b32.xlu0 %v296, 127
      %v301 = vpop.permute.xlu0 %300
      %302 = vrot.lane.b32.xlu0 %v297, 127
      %v303 = vpop.permute.xlu0 %302
      %vm304 = vcmp.lt.s32.totalorder %v215, 127
      %v305 = vsel %vm304, %v301, %v303
      %v306 = vsel %vm304, %v303, %v301
      %v307 = vperm.slane %v200, 4
      %v308 = vperm.slane %v201, 4
      %v309 = vmul.f32 %v305, %v307
      %v310 = vmul.f32 %v306, %v308
      %311 = vst [vmem:[#allocation1] ss:$4 sm:$0xff] %v199
      %v312 = vld.sshfl [vmem:[#allocation1] sm:$0xff pattern:$0x73625140]
      %v313 = vld.sshfl [vmem:[#allocation1 + $0x8] sm:$0xff pattern:$0x73625140]
      %316 = vrot.lane.b32.xlu0 %v312, 127
      %v317 = vpop.permute.xlu0 %316
      %318 = vrot.lane.b32.xlu0 %v313, 127
      %v319 = vpop.permute.xlu0 %318
      %v320 = vsel %vm304, %v317, %v319
      %v321 = vsel %vm304, %v319, %v317
      %v322 = vmul.f32 %v320, %v307
      %v323 = vmul.f32 %v321, %v308
      %324 = vst [vmem:[#allocation1] ss:$4 sm:$0xff] %v198
      %v325 = vld.sshfl [vmem:[#allocation1] sm:$0xff pattern:$0x73625140]
      %v326 = vld.sshfl [vmem:[#allocation1 + $0x8] sm:$0xff pattern:$0x73625140]
      %329 = vrot.lane.b32.xlu0 %v325, 126
      %v330 = vpop.permute.xlu0 %329
      %331 = vrot.lane.b32.xlu0 %v326, 126
      %v332 = vpop.permute.xlu0 %331
      %vm333 = vcmp.lt.s32.totalorder %v215, 126
      %v334 = vsel %vm333, %v330, %v332
      %v335 = vsel %vm333, %v332, %v330
      %v336 = vperm.slane %v200, 5
      %v337 = vperm.slane %v201, 5
      %v338 = vmul.f32 %v334, %v336
      %v339 = vmul.f32 %v335, %v337
      %340 = vst [vmem:[#allocation1] ss:$4 sm:$0xff] %v199
      %v341 = vld.sshfl [vmem:[#allocation1] sm:$0xff pattern:$0x73625140]
      %v342 = vld.sshfl [vmem:[#allocation1 + $0x8] sm:$0xff pattern:$0x73625140]
      %345 = vrot.lane.b32.xlu0 %v341, 126
      %v346 = vpop.permute.xlu0 %345
      %347 = vrot.lane.b32.xlu0 %v342, 126
      %v348 = vpop.permute.xlu0 %347
      %v349 = vsel %vm333, %v346, %v348
      %v350 = vsel %vm333, %v348, %v346
      %v351 = vmul.f32 %v349, %v336
      %v352 = vmul.f32 %v350, %v337
      %353 = vst [vmem:[#allocation1] ss:$4 sm:$0xff] %v198
      %v354 = vld.sshfl [vmem:[#allocation1] sm:$0xff pattern:$0x73625140]
      %v355 = vld.sshfl [vmem:[#allocation1 + $0x8] sm:$0xff pattern:$0x73625140]
      %358 = vrot.lane.b32.xlu0 %v354, 125
      %v359 = vpop.permute.xlu0 %358
      %360 = vrot.lane.b32.xlu0 %v355, 125
      %v361 = vpop.permute.xlu0 %360
      %vm362 = vcmp.lt.s32.totalorder %v215, 125
      %v363 = vsel %vm362, %v359, %v361
      %v364 = vsel %vm362, %v361, %v359
      %v365 = vperm.slane %v200, 6
      %v366 = vperm.slane %v201, 6
      %v367 = vmul.f32 %v363, %v365
      %v368 = vmul.f32 %v364, %v366
      %369 = vst [vmem:[#allocation1] ss:$4 sm:$0xff] %v199
      %v370 = vld.sshfl [vmem:[#allocation1] sm:$0xff pattern:$0x73625140]
      %v371 = vld.sshfl [vmem:[#allocation1 + $0x8] sm:$0xff pattern:$0x73625140]
      %374 = vrot.lane.b32.xlu0 %v370, 125
      %v375 = vpop.permute.xlu0 %374
      %376 = vrot.lane.b32.xlu0 %v371, 125
      %v377 = vpop.permute.xlu0 %376
      %v378 = vsel %vm362, %v375, %v377
      %v379 = vsel %vm362, %v377, %v375
      %v380 = vmul.f32 %v378, %v365
      %v381 = vmul.f32 %v379, %v366
      %s382 = sld [smem:[#allocation8]]
      %s383 = sld [smem:[#allocation8 + $0x31]]
      %v384 = vstv %s382
      %v385 = vmul.f32 %v384, %v221
      %v386 = vmul.f32 %v384, %v222
      %v387 = vadd.f32 %v385, 0.0
      %v388 = vadd.f32 %v386, 0.0
      %v389 = vstv %s383
      %v390 = vmul.f32 %v389, %v235
      %v391 = vmul.f32 %v389, %v236
      %v392 = vadd.f32 %v387, %v390
      %v393 = vadd.f32 %v388, %v391
      %s394 = sld [smem:[#allocation8 + $0x1]]
      %s395 = sld [smem:[#allocation8 + $0x32]]
      %v396 = vstv %s394
      %v397 = vmul.f32 %v396, %v251
      %v398 = vmul.f32 %v396, %v252
      %v399 = vadd.f32 %v392, %v397
      %v400 = vadd.f32 %v393, %v398
      %v401 = vstv %s395
      %v402 = vmul.f32 %v401, %v264
      %v403 = vmul.f32 %v401, %v265
      %v404 = vadd.f32 %v399, %v402
      %v405 = vadd.f32 %v400, %v403
      %s406 = sld [smem:[#allocation8 + $0x2]]
      %s407 = sld [smem:[#allocation8 + $0x33]]
      %v408 = vstv %s406
      %v409 = vmul.f32 %v408, %v280
      %v410 = vmul.f32 %v408, %v281
      %v411 = vadd.f32 %v404, %v409
      %v412 = vadd.f32 %v405, %v410
      %v413 = vstv %s407
      %v414 = vmul.f32 %v413, %v293
      %v415 = vmul.f32 %v413, %v294
      %v416 = vadd.f32 %v411, %v414
      %v417 = vadd.f32 %v412, %v415
      %s418 = sld [smem:[#allocation8 + $0x3]]
      %s419 = sld [smem:[#allocation8 + $0x34]]
      %v420 = vstv %s418
      %v421 = vmul.f32 %v420, %v198
      %423 = vst [vmem:[#allocation1] ss:$4 sm:$0xff] %v421
      %v424 = vld.sshfl [vmem:[#allocation1] sm:$0xff pattern:$0x73625140]
      %v425 = vld.sshfl [vmem:[#allocation1 + $0x8] sm:$0xff pattern:$0x73625140]
      %v428 = vadd.f32 %v416, %v424
      %v429 = vadd.f32 %v417, %v425
      %v430 = vstv %s419
      %v431 = vmul.f32 %v430, %v199
      %433 = vst [vmem:[#allocation1] ss:$4 sm:$0xff] %v431
      %v434 = vld.sshfl [vmem:[#allocation1] sm:$0xff pattern:$0x73625140]
      %v435 = vld.sshfl [vmem:[#allocation1 + $0x8] sm:$0xff pattern:$0x73625140]
      %v438 = vadd.f32 %v428, %v434
      %v439 = vadd.f32 %v429, %v435
      %s440 = sld [smem:[#allocation8 + $0x4]]
      %s441 = sld [smem:[#allocation8 + $0x35]]
      %v442 = vstv %s440
      %v443 = vmul.f32 %v442, %v309
      %v444 = vmul.f32 %v442, %v310
      %v445 = vadd.f32 %v438, %v443
      %v446 = vadd.f32 %v439, %v444
      %v447 = vstv %s441
      %v448 = vmul.f32 %v447, %v322
      %v449 = vmul.f32 %v447, %v323
      %v450 = vadd.f32 %v445, %v448
      %v451 = vadd.f32 %v446, %v449
      %s452 = sld [smem:[#allocation8 + $0x5]]
      %s453 = sld [smem:[#allocation8 + $0x36]]
      %v454 = vstv %s452
      %v455 = vmul.f32 %v454, %v338
      %v456 = vmul.f32 %v454, %v339
      %v457 = vadd.f32 %v450, %v455
      %v458 = vadd.f32 %v451, %v456
      %v459 = vstv %s453
      %v460 = vmul.f32 %v459, %v351
      %v461 = vmul.f32 %v459, %v352
      %v462 = vadd.f32 %v457, %v460
      %v463 = vadd.f32 %v458, %v461
      %s464 = sld [smem:[#allocation8 + $0x6]]
      %s465 = sld [smem:[#allocation8 + $0x37]]
      %v466 = vstv %s464
      %v467 = vmul.f32 %v466, %v367
      %v468 = vmul.f32 %v466, %v368
      %v469 = vadd.f32 %v462, %v467
      %v470 = vadd.f32 %v463, %v468
      %v471 = vstv %s465
      %v472 = vmul.f32 %v471, %v380
      %v473 = vmul.f32 %v471, %v381
      %v474 = vadd.f32 %v469, %v472
      %v475 = vadd.f32 %v470, %v473
      %476 = vrot.lane.b32.xlu0 %v474, 48
      %v477 = vpop.permute.xlu0 %476
      %478 = vrot.lane.b32.xlu0 %v475, 48
      %v479 = vpop.permute.xlu0 %478
      %vm480 = vcmp.lt.s32.totalorder %v215, 48
      %v481 = vsel %vm480, %v477, %v479
      %v482 = vsel %vm480, %v479, %v477
      %v483 = vperm.slane %v200, 7
      %v484 = vperm.slane %v201, 7
      %v485 = vmul.f32 %v482, %v483
      %v486 = vmul.f32 %v481, %v484
      %v487 = vadd.f32 %v485, 0.0
      %v488 = vadd.f32 %v486, 0.0
      %s489 = sld [smem:[#allocation8 + $0x7]]
      %s490 = sld [smem:[#allocation8 + $0x38]]
      %v491 = vstv %s489
      %v492 = vmul.f32 %v491, %v221
      %v493 = vmul.f32 %v491, %v222
      %v494 = vadd.f32 %v492, 0.0
      %v495 = vadd.f32 %v493, 0.0
      %v496 = vstv %s490
      %v497 = vmul.f32 %v496, %v235
      %v498 = vmul.f32 %v496, %v236
      %v499 = vadd.f32 %v494, %v497
      %v500 = vadd.f32 %v495, %v498
      %s501 = sld [smem:[#allocation8 + $0x8]]
      %s502 = sld [smem:[#allocation8 + $0x39]]
      %v503 = vstv %s501
      %v504 = vmul.f32 %v503, %v251
      %v505 = vmul.f32 %v503, %v252
      %v506 = vadd.f32 %v499, %v504
      %v507 = vadd.f32 %v500, %v505
      %v508 = vstv %s502
      %v509 = vmul.f32 %v508, %v264
      %v510 = vmul.f32 %v508, %v265
      %v511 = vadd.f32 %v506, %v509
      %v512 = vadd.f32 %v507, %v510
      %s513 = sld [smem:[#allocation8 + $0x9]]
      %s514 = sld [smem:[#allocation8 + $0x3a]]
      %v515 = vstv %s513
      %v516 = vmul.f32 %v515, %v280
      %v517 = vmul.f32 %v515, %v281
      %v518 = vadd.f32 %v511, %v516
      %v519 = vadd.f32 %v512, %v517
      %v520 = vstv %s514
      %v521 = vmul.f32 %v520, %v293
      %v522 = vmul.f32 %v520, %v294
      %v523 = vadd.f32 %v518, %v521
      %v524 = vadd.f32 %v519, %v522
      %s525 = sld [smem:[#allocation8 + $0xa]]
      %s526 = sld [smem:[#allocation8 + $0x3b]]
      %v527 = vstv %s525
      %v528 = vmul.f32 %v527, %v198
      %530 = vst [vmem:[#allocation1] ss:$4 sm:$0xff] %v528
      %v531 = vld.sshfl [vmem:[#allocation1] sm:$0xff pattern:$0x73625140]
      %v532 = vld.sshfl [vmem:[#allocation1 + $0x8] sm:$0xff pattern:$0x73625140]
      %v535 = vadd.f32 %v523, %v531
      %v536 = vadd.f32 %v524, %v532
      %v537 = vstv %s526
      %v538 = vmul.f32 %v537, %v199
      %540 = vst [vmem:[#allocation1] ss:$4 sm:$0xff] %v538
      %v541 = vld.sshfl [vmem:[#allocation1] sm:$0xff pattern:$0x73625140]
      %v542 = vld.sshfl [vmem:[#allocation1 + $0x8] sm:$0xff pattern:$0x73625140]
      %v545 = vadd.f32 %v535, %v541
      %v546 = vadd.f32 %v536, %v542
      %s547 = sld [smem:[#allocation8 + $0xb]]
      %s548 = sld [smem:[#allocation8 + $0x3c]]
      %v549 = vstv %s547
      %v550 = vmul.f32 %v549, %v309
      %v551 = vmul.f32 %v549, %v310
      %v552 = vadd.f32 %v545, %v550
      %v553 = vadd.f32 %v546, %v551
      %v554 = vstv %s548
      %v555 = vmul.f32 %v554, %v322
      %v556 = vmul.f32 %v554, %v323
      %v557 = vadd.f32 %v552, %v555
      %v558 = vadd.f32 %v553, %v556
      %s559 = sld [smem:[#allocation8 + $0xc]]
      %s560 = sld [smem:[#allocation8 + $0x3d]]
      %v561 = vstv %s559
      %v562 = vmul.f32 %v561, %v338
      %v563 = vmul.f32 %v561, %v339
      %v564 = vadd.f32 %v557, %v562
      %v565 = vadd.f32 %v558, %v563
      %v566 = vstv %s560
      %v567 = vmul.f32 %v566, %v351
      %v568 = vmul.f32 %v566, %v352
      %v569 = vadd.f32 %v564, %v567
      %v570 = vadd.f32 %v565, %v568
      %s571 = sld [smem:[#allocation8 + $0xd]]
      %s572 = sld [smem:[#allocation8 + $0x3e]]
      %v573 = vstv %s571
      %v574 = vmul.f32 %v573, %v367
      %v575 = vmul.f32 %v573, %v368
      %v576 = vadd.f32 %v569, %v574
      %v577 = vadd.f32 %v570, %v575
      %v578 = vstv %s572
      %v579 = vmul.f32 %v578, %v380
      %v580 = vmul.f32 %v578, %v381
      %v581 = vadd.f32 %v576, %v579
      %v582 = vadd.f32 %v577, %v580
      %583 = vrot.lane.b32.xlu0 %v581, 32
      %v584 = vpop.permute.xlu0 %583
      %585 = vrot.lane.b32.xlu0 %v582, 32
      %v586 = vpop.permute.xlu0 %585
      %vm587 = vcmp.lt.s32.totalorder %v215, 32
      %v588 = vsel %vm587, %v584, %v586
      %v589 = vsel %vm587, %v586, %v584
      %v590 = vperm.slane %v202, 0
      %v591 = vperm.slane %v203, 0
      %v592 = vmul.f32 %v589, %v590
      %v593 = vmul.f32 %v588, %v591
      %v594 = vadd.f32 %v487, %v592
      %v595 = vadd.f32 %v488, %v593
      %s596 = sld [smem:[#allocation8 + $0xe]]
      %s597 = sld [smem:[#allocation8 + $0x3f]]
      %v598 = vstv %s596
      %v599 = vmul.f32 %v598, %v221
      %v600 = vmul.f32 %v598, %v222
      %v601 = vadd.f32 %v599, 0.0
      %v602 = vadd.f32 %v600, 0.0
      %v603 = vstv %s597
      %v604 = vmul.f32 %v603, %v235
      %v605 = vmul.f32 %v603, %v236
      %v606 = vadd.f32 %v601, %v604
      %v607 = vadd.f32 %v602, %v605
      %s608 = sld [smem:[#allocation8 + $0xf]]
      %s609 = sld [smem:[#allocation8 + $0x40]]
      %v610 = vstv %s608
      %v611 = vmul.f32 %v610, %v251
      %v612 = vmul.f32 %v610, %v252
      %v613 = vadd.f32 %v606, %v611
      %v614 = vadd.f32 %v607, %v612
      %v615 = vstv %s609
      %v616 = vmul.f32 %v615, %v264
      %v617 = vmul.f32 %v615, %v265
      %v618 = vadd.f32 %v613, %v616
      %v619 = vadd.f32 %v614, %v617
      %s620 = sld [smem:[#allocation8 + $0x10]]
      %s621 = sld [smem:[#allocation8 + $0x41]]
      %v622 = vstv %s620
      %v623 = vmul.f32 %v622, %v280
      %v624 = vmul.f32 %v622, %v281
      %v625 = vadd.f32 %v618, %v623
      %v626 = vadd.f32 %v619, %v624
      %v627 = vstv %s621
      %v628 = vmul.f32 %v627, %v293
      %v629 = vmul.f32 %v627, %v294
      %v630 = vadd.f32 %v625, %v628
      %v631 = vadd.f32 %v626, %v629
      %s632 = sld [smem:[#allocation8 + $0x11]]
      %s633 = sld [smem:[#allocation8 + $0x42]]
      %v634 = vstv %s632
      %v635 = vmul.f32 %v634, %v198
      %637 = vst [vmem:[#allocation1] ss:$4 sm:$0xff] %v635
      %v638 = vld.sshfl [vmem:[#allocation1] sm:$0xff pattern:$0x73625140]
      %v639 = vld.sshfl [vmem:[#allocation1 + $0x8] sm:$0xff pattern:$0x73625140]
      %v642 = vadd.f32 %v630, %v638
      %v643 = vadd.f32 %v631, %v639
      %v644 = vstv %s633
      %v645 = vmul.f32 %v644, %v199
      %647 = vst [vmem:[#allocation1] ss:$4 sm:$0xff] %v645
      %v648 = vld.sshfl [vmem:[#allocation1] sm:$0xff pattern:$0x73625140]
      %v649 = vld.sshfl [vmem:[#allocation1 + $0x8] sm:$0xff pattern:$0x73625140]
      %v652 = vadd.f32 %v642, %v648
      %v653 = vadd.f32 %v643, %v649
      %s654 = sld [smem:[#allocation8 + $0x12]]
      %s655 = sld [smem:[#allocation8 + $0x43]]
      %v656 = vstv %s654
      %v657 = vmul.f32 %v656, %v309
      %v658 = vmul.f32 %v656, %v310
      %v659 = vadd.f32 %v652, %v657
      %v660 = vadd.f32 %v653, %v658
      %v661 = vstv %s655
      %v662 = vmul.f32 %v661, %v322
      %v663 = vmul.f32 %v661, %v323
      %v664 = vadd.f32 %v659, %v662
      %v665 = vadd.f32 %v660, %v663
      %s666 = sld [smem:[#allocation8 + $0x13]]
      %s667 = sld [smem:[#allocation8 + $0x44]]
      %v668 = vstv %s666
      %v669 = vmul.f32 %v668, %v338
      %v670 = vmul.f32 %v668, %v339
      %v671 = vadd.f32 %v664, %v669
      %v672 = vadd.f32 %v665, %v670
      %v673 = vstv %s667
      %v674 = vmul.f32 %v673, %v351
      %v675 = vmul.f32 %v673, %v352
      %v676 = vadd.f32 %v671, %v674
      %v677 = vadd.f32 %v672, %v675
      %s678 = sld [smem:[#allocation8 + $0x14]]
      %s679 = sld [smem:[#allocation8 + $0x45]]
      %v680 = vstv %s678
      %v681 = vmul.f32 %v680, %v367
      %v682 = vmul.f32 %v680, %v368
      %v683 = vadd.f32 %v676, %v681
      %v684 = vadd.f32 %v677, %v682
      %v685 = vstv %s679
      %v686 = vmul.f32 %v685, %v380
      %v687 = vmul.f32 %v685, %v381
      %v688 = vadd.f32 %v683, %v686
      %v689 = vadd.f32 %v684, %v687
      %690 = vrot.lane.b32.xlu0 %v688, 16
      %v691 = vpop.permute.xlu0 %690
      %692 = vrot.lane.b32.xlu0 %v689, 16
      %v693 = vpop.permute.xlu0 %692
      %vm694 = vcmp.lt.s32.totalorder %v215, 16
      %v695 = vsel %vm694, %v691, %v693
      %v696 = vsel %vm694, %v693, %v691
      %v697 = vperm.slane %v202, 1
      %v698 = vperm.slane %v203, 1
      %v699 = vmul.f32 %v696, %v697
      %v700 = vmul.f32 %v695, %v698
      %v701 = vadd.f32 %v594, %v699
      %v702 = vadd.f32 %v595, %v700
      %s703 = sld [smem:[#allocation8 + $0x15]]
      %s704 = sld [smem:[#allocation8 + $0x46]]
      %v705 = vstv %s703
      %v706 = vmul.f32 %v705, %v221
      %v707 = vmul.f32 %v705, %v222
      %v708 = vadd.f32 %v706, 0.0
      %v709 = vadd.f32 %v707, 0.0
      %v710 = vstv %s704
      %v711 = vmul.f32 %v710, %v235
      %v712 = vmul.f32 %v710, %v236
      %v713 = vadd.f32 %v708, %v711
      %v714 = vadd.f32 %v709, %v712
      %s715 = sld [smem:[#allocation8 + $0x16]]
      %s716 = sld [smem:[#allocation8 + $0x47]]
      %v717 = vstv %s715
      %v718 = vmul.f32 %v717, %v251
      %v719 = vmul.f32 %v717, %v252
      %v720 = vadd.f32 %v713, %v718
      %v721 = vadd.f32 %v714, %v719
      %v722 = vstv %s716
      %v723 = vmul.f32 %v722, %v264
      %v724 = vmul.f32 %v722, %v265
      %v725 = vadd.f32 %v720, %v723
      %v726 = vadd.f32 %v721, %v724
      %s727 = sld [smem:[#allocation8 + $0x17]]
      %s728 = sld [smem:[#allocation8 + $0x48]]
      %v729 = vstv %s727
      %v730 = vmul.f32 %v729, %v280
      %v731 = vmul.f32 %v729, %v281
      %v732 = vadd.f32 %v725, %v730
      %v733 = vadd.f32 %v726, %v731
      %v734 = vstv %s728
      %v735 = vmul.f32 %v734, %v293
      %v736 = vmul.f32 %v734, %v294
      %v737 = vadd.f32 %v732, %v735
      %v738 = vadd.f32 %v733, %v736
      %s739 = sld [smem:[#allocation8 + $0x18]]
      %s740 = sld [smem:[#allocation8 + $0x49]]
      %v741 = vstv %s739
      %v742 = vmul.f32 %v741, %v198
      %744 = vst [vmem:[#allocation1] ss:$4 sm:$0xff] %v742
      %v745 = vld.sshfl [vmem:[#allocation1] sm:$0xff pattern:$0x73625140]
      %v746 = vld.sshfl [vmem:[#allocation1 + $0x8] sm:$0xff pattern:$0x73625140]
      %v749 = vadd.f32 %v737, %v745
      %v750 = vadd.f32 %v738, %v746
      %v751 = vstv %s740
      %v752 = vmul.f32 %v751, %v199
      %754 = vst [vmem:[#allocation1] ss:$4 sm:$0xff] %v752
      %v755 = vld.sshfl [vmem:[#allocation1] sm:$0xff pattern:$0x73625140]
      %v756 = vld.sshfl [vmem:[#allocation1 + $0x8] sm:$0xff pattern:$0x73625140]
      %v759 = vadd.f32 %v749, %v755
      %v760 = vadd.f32 %v750, %v756
      %s761 = sld [smem:[#allocation8 + $0x19]]
      %s762 = sld [smem:[#allocation8 + $0x4a]]
      %v763 = vstv %s761
      %v764 = vmul.f32 %v763, %v309
      %v765 = vmul.f32 %v763, %v310
      %v766 = vadd.f32 %v759, %v764
      %v767 = vadd.f32 %v760, %v765
      %v768 = vstv %s762
      %v769 = vmul.f32 %v768, %v322
      %v770 = vmul.f32 %v768, %v323
      %v771 = vadd.f32 %v766, %v769
      %v772 = vadd.f32 %v767, %v770
      %s773 = sld [smem:[#allocation8 + $0x1a]]
      %s774 = sld [smem:[#allocation8 + $0x4b]]
      %v775 = vstv %s773
      %v776 = vmul.f32 %v775, %v338
      %v777 = vmul.f32 %v775, %v339
      %v778 = vadd.f32 %v771, %v776
      %v779 = vadd.f32 %v772, %v777
      %v780 = vstv %s774
      %v781 = vmul.f32 %v780, %v351
      %v782 = vmul.f32 %v780, %v352
      %v783 = vadd.f32 %v778, %v781
      %v784 = vadd.f32 %v779, %v782
      %s785 = sld [smem:[#allocation8 + $0x1b]]
      %s786 = sld [smem:[#allocation8 + $0x4c]]
      %v787 = vstv %s785
      %v788 = vmul.f32 %v787, %v367
      %v789 = vmul.f32 %v787, %v368
      %v790 = vadd.f32 %v783, %v788
      %v791 = vadd.f32 %v784, %v789
      %v792 = vstv %s786
      %v793 = vmul.f32 %v792, %v380
      %v794 = vmul.f32 %v792, %v381
      %v795 = vadd.f32 %v790, %v793
      %v796 = vadd.f32 %v791, %v794
      %v797 = vadd.f32 %v701, %v795
      %v798 = vadd.f32 %v702, %v796
      %s799 = sld [smem:[#allocation8 + $0x1c]]
      %s800 = sld [smem:[#allocation8 + $0x4d]]
      %v801 = vstv %s799
      %v802 = vmul.f32 %v801, %v221
      %v803 = vmul.f32 %v801, %v222
      %v804 = vadd.f32 %v802, 0.0
      %v805 = vadd.f32 %v803, 0.0
      %v806 = vstv %s800
      %v807 = vmul.f32 %v806, %v235
      %v808 = vmul.f32 %v806, %v236
      %v809 = vadd.f32 %v804, %v807
      %v810 = vadd.f32 %v805, %v808
      %s811 = sld [smem:[#allocation8 + $0x1d]]
      %s812 = sld [smem:[#allocation8 + $0x4e]]
      %v813 = vstv %s811
      %v814 = vmul.f32 %v813, %v251
      %v815 = vmul.f32 %v813, %v252
      %v816 = vadd.f32 %v809, %v814
      %v817 = vadd.f32 %v810, %v815
      %v818 = vstv %s812
      %v819 = vmul.f32 %v818, %v264
      %v820 = vmul.f32 %v818, %v265
      %v821 = vadd.f32 %v816, %v819
      %v822 = vadd.f32 %v817, %v820
      %s823 = sld [smem:[#allocation8 + $0x1e]]
      %s824 = sld [smem:[#allocation8 + $0x4f]]
      %v825 = vstv %s823
      %v826 = vmul.f32 %v825, %v280
      %v827 = vmul.f32 %v825, %v281
      %v828 = vadd.f32 %v821, %v826
      %v829 = vadd.f32 %v822, %v827
      %v830 = vstv %s824
      %v831 = vmul.f32 %v830, %v293
      %v832 = vmul.f32 %v830, %v294
      %v833 = vadd.f32 %v828, %v831
      %v834 = vadd.f32 %v829, %v832
      %s835 = sld [smem:[#allocation8 + $0x1f]]
      %s836 = sld [smem:[#allocation8 + $0x50]]
      %v837 = vstv %s835
      %v838 = vmul.f32 %v837, %v198
      %840 = vst [vmem:[#allocation1] ss:$4 sm:$0xff] %v838
      %v841 = vld.sshfl [vmem:[#allocation1] sm:$0xff pattern:$0x73625140]
      %v842 = vld.sshfl [vmem:[#allocation1 + $0x8] sm:$0xff pattern:$0x73625140]
      %v845 = vadd.f32 %v833, %v841
      %v846 = vadd.f32 %v834, %v842
      %v847 = vstv %s836
      %v848 = vmul.f32 %v847, %v199
      %850 = vst [vmem:[#allocation1] ss:$4 sm:$0xff] %v848
      %v851 = vld.sshfl [vmem:[#allocation1] sm:$0xff pattern:$0x73625140]
      %v852 = vld.sshfl [vmem:[#allocation1 + $0x8] sm:$0xff pattern:$0x73625140]
      %v855 = vadd.f32 %v845, %v851
      %v856 = vadd.f32 %v846, %v852
      %s857 = sld [smem:[#allocation8 + $0x20]]
      %s858 = sld [smem:[#allocation8 + $0x51]]
      %v859 = vstv %s857
      %v860 = vmul.f32 %v859, %v309
      %v861 = vmul.f32 %v859, %v310
      %v862 = vadd.f32 %v855, %v860
      %v863 = vadd.f32 %v856, %v861
      %v864 = vstv %s858
      %v865 = vmul.f32 %v864, %v322
      %v866 = vmul.f32 %v864, %v323
      %v867 = vadd.f32 %v862, %v865
      %v868 = vadd.f32 %v863, %v866
      %s869 = sld [smem:[#allocation8 + $0x21]]
      %s870 = sld [smem:[#allocation8 + $0x52]]
      %v871 = vstv %s869
      %v872 = vmul.f32 %v871, %v338
      %v873 = vmul.f32 %v871, %v339
      %v874 = vadd.f32 %v867, %v872
      %v875 = vadd.f32 %v868, %v873
      %v876 = vstv %s870
      %v877 = vmul.f32 %v876, %v351
      %v878 = vmul.f32 %v876, %v352
      %v879 = vadd.f32 %v874, %v877
      %v880 = vadd.f32 %v875, %v878
      %s881 = sld [smem:[#allocation8 + $0x22]]
      %s882 = sld [smem:[#allocation8 + $0x53]]
      %v883 = vstv %s881
      %v884 = vmul.f32 %v883, %v367
      %v885 = vmul.f32 %v883, %v368
      %v886 = vadd.f32 %v879, %v884
      %v887 = vadd.f32 %v880, %v885
      %v888 = vstv %s882
      %v889 = vmul.f32 %v888, %v380
      %v890 = vmul.f32 %v888, %v381
      %v891 = vadd.f32 %v886, %v889
      %v892 = vadd.f32 %v887, %v890
      %893 = vrot.lane.b32.xlu0 %v891, 112
      %v894 = vpop.permute.xlu0 %893
      %895 = vrot.lane.b32.xlu0 %v892, 112
      %v896 = vpop.permute.xlu0 %895
      %vm897 = vcmp.lt.s32.totalorder %v215, 112
      %v898 = vsel %vm897, %v894, %v896
      %v899 = vsel %vm897, %v896, %v894
      %v900 = vperm.slane %v202, 3
      %v901 = vperm.slane %v203, 3
      %v902 = vmul.f32 %v898, %v900
      %v903 = vmul.f32 %v899, %v901
      %v904 = vadd.f32 %v797, %v902
      %v905 = vadd.f32 %v798, %v903
      %s906 = sld [smem:[#allocation8 + $0x23]]
      %s907 = sld [smem:[#allocation8 + $0x54]]
      %v908 = vstv %s906
      %v909 = vmul.f32 %v908, %v221
      %v910 = vmul.f32 %v908, %v222
      %v911 = vadd.f32 %v909, 0.0
      %v912 = vadd.f32 %v910, 0.0
      %v913 = vstv %s907
      %v914 = vmul.f32 %v913, %v235
      %v915 = vmul.f32 %v913, %v236
      %v916 = vadd.f32 %v911, %v914
      %v917 = vadd.f32 %v912, %v915
      %s918 = sld [smem:[#allocation8 + $0x24]]
      %s919 = sld [smem:[#allocation8 + $0x55]]
      %v920 = vstv %s918
      %v921 = vmul.f32 %v920, %v251
      %v922 = vmul.f32 %v920, %v252
      %v923 = vadd.f32 %v916, %v921
      %v924 = vadd.f32 %v917, %v922
      %v925 = vstv %s919
      %v926 = vmul.f32 %v925, %v264
      %v927 = vmul.f32 %v925, %v265
      %v928 = vadd.f32 %v923, %v926
      %v929 = vadd.f32 %v924, %v927
      %s930 = sld [smem:[#allocation8 + $0x25]]
      %s931 = sld [smem:[#allocation8 + $0x56]]
      %v932 = vstv %s930
      %v933 = vmul.f32 %v932, %v280
      %v934 = vmul.f32 %v932, %v281
      %v935 = vadd.f32 %v928, %v933
      %v936 = vadd.f32 %v929, %v934
      %v937 = vstv %s931
      %v938 = vmul.f32 %v937, %v293
      %v939 = vmul.f32 %v937, %v294
      %v940 = vadd.f32 %v935, %v938
      %v941 = vadd.f32 %v936, %v939
      %s942 = sld [smem:[#allocation8 + $0x26]]
      %s943 = sld [smem:[#allocation8 + $0x57]]
      %v944 = vstv %s942
      %v945 = vmul.f32 %v944, %v198
      %947 = vst [vmem:[#allocation1] ss:$4 sm:$0xff] %v945
      %v948 = vld.sshfl [vmem:[#allocation1] sm:$0xff pattern:$0x73625140]
      %v949 = vld.sshfl [vmem:[#allocation1 + $0x8] sm:$0xff pattern:$0x73625140]
      %v952 = vadd.f32 %v940, %v948
      %v953 = vadd.f32 %v941, %v949
      %v954 = vstv %s943
      %v955 = vmul.f32 %v954, %v199
      %957 = vst [vmem:[#allocation1] ss:$4 sm:$0xff] %v955
      %v958 = vld.sshfl [vmem:[#allocation1] sm:$0xff pattern:$0x73625140]
      %v959 = vld.sshfl [vmem:[#allocation1 + $0x8] sm:$0xff pattern:$0x73625140]
      %v962 = vadd.f32 %v952, %v958
      %v963 = vadd.f32 %v953, %v959
      %s964 = sld [smem:[#allocation8 + $0x27]]
      %s965 = sld [smem:[#allocation8 + $0x58]]
      %v966 = vstv %s964
      %v967 = vmul.f32 %v966, %v309
      %v968 = vmul.f32 %v966, %v310
      %v969 = vadd.f32 %v962, %v967
      %v970 = vadd.f32 %v963, %v968
      %v971 = vstv %s965
      %v972 = vmul.f32 %v971, %v322
      %v973 = vmul.f32 %v971, %v323
      %v974 = vadd.f32 %v969, %v972
      %v975 = vadd.f32 %v970, %v973
      %s976 = sld [smem:[#allocation8 + $0x28]]
      %s977 = sld [smem:[#allocation8 + $0x59]]
      %v978 = vstv %s976
      %v979 = vmul.f32 %v978, %v338
      %v980 = vmul.f32 %v978, %v339
      %v981 = vadd.f32 %v974, %v979
      %v982 = vadd.f32 %v975, %v980
      %v983 = vstv %s977
      %v984 = vmul.f32 %v983, %v351
      %v985 = vmul.f32 %v983, %v352
      %v986 = vadd.f32 %v981, %v984
      %v987 = vadd.f32 %v982, %v985
      %s988 = sld [smem:[#allocation8 + $0x29]]
      %s989 = sld [smem:[#allocation8 + $0x5a]]
      %v990 = vstv %s988
      %v991 = vmul.f32 %v990, %v367
      %v992 = vmul.f32 %v990, %v368
      %v993 = vadd.f32 %v986, %v991
      %v994 = vadd.f32 %v987, %v992
      %v995 = vstv %s989
      %v996 = vmul.f32 %v995, %v380
      %v997 = vmul.f32 %v995, %v381
      %v998 = vadd.f32 %v993, %v996
      %v999 = vadd.f32 %v994, %v997
      %1000 = vrot.lane.b32.xlu0 %v998, 96
      %v1001 = vpop.permute.xlu0 %1000
      %1002 = vrot.lane.b32.xlu0 %v999, 96
      %v1003 = vpop.permute.xlu0 %1002
      %vm1004 = vcmp.lt.s32.totalorder %v215, 96
      %v1005 = vsel %vm1004, %v1001, %v1003
      %v1006 = vsel %vm1004, %v1003, %v1001
      %v1007 = vperm.slane %v202, 4
      %v1008 = vperm.slane %v203, 4
      %v1009 = vmul.f32 %v1005, %v1007
      %v1010 = vmul.f32 %v1006, %v1008
      %v1011 = vadd.f32 %v904, %v1009
      %v1012 = vadd.f32 %v905, %v1010
      %s1013 = sld [smem:[#allocation8 + $0x2a]]
      %s1014 = sld [smem:[#allocation8 + $0x5b]]
      %v1015 = vstv %s1013
      %v1016 = vmul.f32 %v1015, %v221
      %v1017 = vmul.f32 %v1015, %v222
      %v1018 = vadd.f32 %v1016, 0.0
      %v1019 = vadd.f32 %v1017, 0.0
      %v1020 = vstv %s1014
      %v1021 = vmul.f32 %v1020, %v235
      %v1022 = vmul.f32 %v1020, %v236
      %v1023 = vadd.f32 %v1018, %v1021
      %v1024 = vadd.f32 %v1019, %v1022
      %s1025 = sld [smem:[#allocation8 + $0x2b]]
      %s1026 = sld [smem:[#allocation8 + $0x5c]]
      %v1027 = vstv %s1025
      %v1028 = vmul.f32 %v1027, %v251
      %v1029 = vmul.f32 %v1027, %v252
      %v1030 = vadd.f32 %v1023, %v1028
      %v1031 = vadd.f32 %v1024, %v1029
      %v1032 = vstv %s1026
      %v1033 = vmul.f32 %v1032, %v264
      %v1034 = vmul.f32 %v1032, %v265
      %v1035 = vadd.f32 %v1030, %v1033
      %v1036 = vadd.f32 %v1031, %v1034
      %s1037 = sld [smem:[#allocation8 + $0x2c]]
      %s1038 = sld [smem:[#allocation8 + $0x5d]]
      %v1039 = vstv %s1037
      %v1040 = vmul.f32 %v1039, %v280
      %v1041 = vmul.f32 %v1039, %v281
      %v1042 = vadd.f32 %v1035, %v1040
      %v1043 = vadd.f32 %v1036, %v1041
      %v1044 = vstv %s1038
      %v1045 = vmul.f32 %v1044, %v293
      %v1046 = vmul.f32 %v1044, %v294
      %v1047 = vadd.f32 %v1042, %v1045
      %v1048 = vadd.f32 %v1043, %v1046
      %s1049 = sld [smem:[#allocation8 + $0x2d]]
      %s1050 = sld [smem:[#allocation8 + $0x5e]]
      %v1051 = vstv %s1049
      %v1052 = vmul.f32 %v1051, %v198
      %1054 = vst [vmem:[#allocation1] ss:$4 sm:$0xff] %v1052
      %v1055 = vld.sshfl [vmem:[#allocation1] sm:$0xff pattern:$0x73625140]
      %v1056 = vld.sshfl [vmem:[#allocation1 + $0x8] sm:$0xff pattern:$0x73625140]
      %v1059 = vadd.f32 %v1047, %v1055
      %v1060 = vadd.f32 %v1048, %v1056
      %v1061 = vstv %s1050
      %v1062 = vmul.f32 %v1061, %v199
      %1064 = vst [vmem:[#allocation1] ss:$4 sm:$0xff] %v1062
      %v1065 = vld.sshfl [vmem:[#allocation1] sm:$0xff pattern:$0x73625140]
      %v1066 = vld.sshfl [vmem:[#allocation1 + $0x8] sm:$0xff pattern:$0x73625140]
      %v1069 = vadd.f32 %v1059, %v1065
      %v1070 = vadd.f32 %v1060, %v1066
      %s1071 = sld [smem:[#allocation8 + $0x2e]]
      %s1072 = sld [smem:[#allocation8 + $0x5f]]
      %v1073 = vstv %s1071
      %v1074 = vmul.f32 %v1073, %v309
      %v1075 = vmul.f32 %v1073, %v310
      %v1076 = vadd.f32 %v1069, %v1074
      %v1077 = vadd.f32 %v1070, %v1075
      %v1078 = vstv %s1072
      %v1079 = vmul.f32 %v1078, %v322
      %v1080 = vmul.f32 %v1078, %v323
      %v1081 = vadd.f32 %v1076, %v1079
      %v1082 = vadd.f32 %v1077, %v1080
      %s1083 = sld [smem:[#allocation8 + $0x2f]]
      %s1084 = sld [smem:[#allocation8 + $0x60]]
      %v1085 = vstv %s1083
      %v1086 = vmul.f32 %v1085, %v338
      %v1087 = vmul.f32 %v1085, %v339
      %v1088 = vadd.f32 %v1081, %v1086
      %v1089 = vadd.f32 %v1082, %v1087
      %v1090 = vstv %s1084
      %v1091 = vmul.f32 %v1090, %v351
      %v1092 = vmul.f32 %v1090, %v352
      %v1093 = vadd.f32 %v1088, %v1091
      %v1094 = vadd.f32 %v1089, %v1092
      %s1095 = sld [smem:[#allocation8 + $0x30]]
      %s1096 = sld [smem:[#allocation8 + $0x61]]
      %v1097 = vstv %s1095
      %v1098 = vmul.f32 %v1097, %v367
      %v1099 = vmul.f32 %v1097, %v368
      %v1100 = vadd.f32 %v1093, %v1098
      %v1101 = vadd.f32 %v1094, %v1099
      %v1102 = vstv %s1096
      %v1103 = vmul.f32 %v1102, %v380
      %v1104 = vmul.f32 %v1102, %v381
      %v1105 = vadd.f32 %v1100, %v1103
      %v1106 = vadd.f32 %v1101, %v1104
      %1107 = vrot.lane.b32.xlu0 %v1105, 80
      %v1108 = vpop.permute.xlu0 %1107
      %1109 = vrot.lane.b32.xlu0 %v1106, 80
      %v1110 = vpop.permute.xlu0 %1109
      %vm1111 = vcmp.lt.s32.totalorder %v215, 80
      %v1112 = vsel %vm1111, %v1108, %v1110
      %v1113 = vsel %vm1111, %v1110, %v1108
      %v1114 = vperm.slane %v202, 5
      %v1115 = vperm.slane %v203, 5
      %v1116 = vmul.f32 %v1112, %v1114
      %v1117 = vmul.f32 %v1113, %v1115
      %v1118 = vadd.f32 %v1011, %v1116
      %v1119 = vadd.f32 %v1012, %v1117
      %v1120 = vxor.u32 %v1118, 2147483648
      %v1121 = vxor.u32 %v1119, 2147483648
      %v1122 = vmul.f32 %v1120, 1.442695
      %v1123 = vpow.pop %v1122
      %v1124 = vmul.f32 %v1121, 1.442695
      %v1125 = vpow.pop %v1124
      %v1126 = vadd.f32 %v1123, 1.0
      %v1127 = vadd.f32 %v1125, 1.0
      %v1128 = vrcp.pop %v1126
      %v1129 = vmul.f32 %v1126, %v1128
      %v1130 = vsub.f32 1.0, %v1129
      %v1131 = vmul.f32 %v1128, %v1130
      %v1132 = vadd.f32 %v1128, %v1131
      %vm1133 = vweird.f32 %v1126
      %vm1134 = vweird.f32 %v1128
      %vm1135 = vmor %vm1133, %vm1134
      %v1136 = vsel %vm1135, %v1128, %v1132
      %v1137 = vand.u32 2147483647, %v1126
      %vm1138 = vcmp.eq.f32.partialorder %v1137, 8.507059e+37
      %v1139 = vand.u32 %v1126, 2147483648
      %v1140 = vor.u32 1.1754944e-38, %v1139
      %v1141 = vsel %vm1138, %v1140, %v1136
      %v1142 = vmul.f32 1.0, %v1141
      %v1143 = vrcp.pop %v1127
      %v1144 = vmul.f32 %v1127, %v1143
      %v1145 = vsub.f32 1.0, %v1144
      %v1146 = vmul.f32 %v1143, %v1145
      %v1147 = vadd.f32 %v1143, %v1146
      %vm1148 = vweird.f32 %v1127
      %vm1149 = vweird.f32 %v1143
      %vm1150 = vmor %vm1148, %vm1149
      %v1151 = vsel %vm1150, %v1143, %v1147
      %v1152 = vand.u32 2147483647, %v1127
      %vm1153 = vcmp.eq.f32.partialorder %v1152, 8.507059e+37
      %v1154 = vand.u32 %v1127, 2147483648
      %v1155 = vor.u32 1.1754944e-38, %v1154
      %v1156 = vsel %vm1153, %v1155, %v1151
      %v1157 = vmul.f32 1.0, %v1156
      %v1160 = vrot.slane %v1157, 6
      %v1161 = vsel %vm117, %v1142, %v1160
      %1163 = vst [vmem:[#allocation11] sm:$0xf] %v1161
    $region33: #{tpu_custom_call.1} parent=1 // pred_fallthru
      _
    // Predicated region
    $region34: #{tpu_custom_call.1} parent=1 // pred_check
      _
    $region35: #{tpu_custom_call.1} parent=1 // pred_check_branch
      %1165 = sbr.rel (0) target = $region37
    $region36: #{tpu_custom_call.1} parent=1 // pred_region
      %1167 = vsyncadd [#allocation6], 0
      %s1169 = sshll.u32 [#allocation11], 4
      %s1170 = int_to_ptr.vmem [resolvable:$true] %s1169
      %s1171 = sshll.u32 %s3, 4
      %s1172 = int_to_ptr.hbm [resolvable:$true] %s1171
      %1174 = dma.vmem_to_hbm [thread:$0]  %s1170, 64, %s1172, [#allocation6]
    $region37: #{tpu_custom_call.1} parent=1 // pred_fallthru
      _
    // Predicated region
    $region38: #{tpu_custom_call.1} parent=1 // pred_check
      _
    $region39: #{tpu_custom_call.1} parent=1 // pred_check_branch
      %1176 = sbr.rel (0) target = $region41
    $region40: #{tpu_custom_call.1} parent=1 // pred_region
      %1178 = dma.done [#allocation6], 64
    $region41: #{tpu_custom_call.1} parent=1 // pred_fallthru
      _
    %1179 = vsyncpa [#allocation5], 1
    %1180 = vsyncpa [#allocation10], 1
    %1181 = vsyncpa [#allocation6], 1
    %1182 = vsyncpa [#allocation7], 1

</llo_original>
